<compile_context>
chip_gen: v7x
topology: tpu7x:2x2x1
jax: 0.10.0
libtpu: 0.0.40
codegen_flags: <defaults>
</compile_context>

<pallas_src>
import math
import functools

import jax
import jax.numpy as jnp
from jax.experimental import pallas as pl
from jax.experimental.pallas import tpu as pltpu

# ---- model config (small, consistent with the module) ----
B = 2          # batch
T = 8          # sequence length
D_MODEL = 32
N_HEAD = 4
D_K = D_MODEL // N_HEAD
D_FF = 64
EPS = 1e-5
NEG = -1e9


def encoder_block_kernel(x_ref, mask_ref, gammas_ref, betas_ref,
                         w_qkv_ref, b_qkv_ref, wo_ref, bo_ref,
                         w1_ref, b1_ref, w2_ref, b2_ref,
                         xo_ref, attn_ref):
    """One grid step processes `bb` batch elements (bb = leading block dim)."""
    bb, t, d = x_ref.shape
    n_head = attn_ref.shape[1]
    d_k = d // n_head
    n = bb * t

    # Fold batch onto the sublane axis for all batch-independent matmuls.
    x = x_ref[...].astype(jnp.float32).reshape(n, d)            # [N, D]

    def layer_norm(v, idx):
        mu = jnp.mean(v, axis=-1, keepdims=True)
        var = jnp.mean((v - mu) ** 2, axis=-1, keepdims=True)
        vhat = (v - mu) * jax.lax.rsqrt(var + EPS)
        return vhat * gammas_ref[idx][None, :] + betas_ref[idx][None, :]

    # ---------------- self-attention block (pre-norm + residual) -------------
    xn = layer_norm(x, 0)                                        # [N, D]
    xn_h = jnp.broadcast_to(xn[None], (n_head, n, d))            # [H, N, D]

    scale = 1.0 / math.sqrt(d_k)
    # heads-batched projections (head-major weights, heads on the leading dim);
    # softmax scale folded into q once.
    q = (jnp.einsum('hnd,hdk->hnk', xn_h, w_qkv_ref[0],
                    preferred_element_type=jnp.float32) + b_qkv_ref[0]) * scale
    k = jnp.einsum('hnd,hdk->hnk', xn_h, w_qkv_ref[1],
                   preferred_element_type=jnp.float32) + b_qkv_ref[1]
    v = jnp.einsum('hnd,hdk->hnk', xn_h, w_qkv_ref[2],
                   preferred_element_type=jnp.float32) + b_qkv_ref[2]

    mask = mask_ref[...].astype(jnp.float32)                     # [bb, T, T]
    p_list, ctx_list = [], []
    for b in range(bb):                                          # static unroll
        lo = b * t
        qb = q[:, lo:lo + t, :]                                   # [H, T, DK]
        kb = k[:, lo:lo + t, :]
        vb = v[:, lo:lo + t, :]
        s = jnp.einsum('hqd,hkd->hqk', qb, kb,
                       preferred_element_type=jnp.float32)        # [H, T, T]
        s = jnp.where(mask[b][None, :, :] == 0.0, NEG, s)         # once per batch
        s = s - jnp.max(s, axis=-1, keepdims=True)
        p = jnp.exp(s)
        p = p * pl.reciprocal(jnp.sum(p, axis=-1, keepdims=True), approx=True)
        p_list.append(p)
        ctx_list.append(jnp.einsum('hqk,hkd->hqd', p, vb,
                                   preferred_element_type=jnp.float32))

    ctx = jnp.concatenate(ctx_list, axis=1)                       # [H, N, DK]
    p_all = jnp.stack(p_list, axis=0)                             # [bb, H, T, T]

    # output projection: heads-batched matmul, then reduce over heads
    o_h = jnp.einsum('hnk,hkm->hnm', ctx, wo_ref[...],
                     preferred_element_type=jnp.float32)          # [H, N, D]
    o = functools.reduce(lambda a_, b_: a_ + b_,
                         [o_h[h] for h in range(n_head)])         # [N, D]
    x = o + bo_ref[0][None, :] + x

    # ---------------- feed-forward block (pre-norm + residual) ---------------
    xn = layer_norm(x, 1)
    hdn = jnp.maximum(
        jnp.dot(xn, w1_ref[...], preferred_element_type=jnp.float32)
        + b1_ref[0][None, :], 0.0)
    ff = jnp.dot(hdn, w2_ref[...], preferred_element_type=jnp.float32) \
        + b2_ref[0][None, :]
    x = ff + x

    # single bulk store per output (no per-head / per-row partial stores)
    xo_ref[...] = x.reshape(bb, t, d).astype(xo_ref.dtype)
    attn_ref[...] = p_all.astype(attn_ref.dtype)


def _batch_block(batch):
    """Fold the whole batch into one grid step on single-TensorCore chips."""
    try:
        kind = jax.devices()[0].device_kind.lower()
    except Exception:
        return 1
    single_tc = any(tag in kind for tag in
                    ("v5e", "v5 lite", "v5lite", "v6e", "v6 lite", "v6lite"))
    return batch if single_tc else 1


def encoder_block(x, mask, params, n_head=N_HEAD):
    """x: [B, T, D]; mask: [B, T, T] float (1 = keep, 0 = mask)."""
    gammas, betas, wa, ba, w1, b1, w2, b2 = params
    Bn, Tn, Dn = x.shape
    d_k = Dn // n_head

    # Head-major repack of attention weights (plain JAX in the wrapper; free).
    w_qkv = wa[:3].reshape(3, Dn, n_head, d_k).transpose(0, 2, 1, 3)  # [3,H,D,DK]
    b_qkv = ba[:3].reshape(3, n_head, 1, d_k)                         # [3,H,1,DK]
    wo = wa[3].reshape(n_head, d_k, Dn)                               # [H,DK,D]
    bo = ba[3].reshape(1, Dn)                                         # [1,D]

    bb = _batch_block(Bn)
    if Bn % bb:
        bb = 1
    grid = (Bn // bb,)

    def data_spec(tail_shape):
        block = (bb,) + tuple(tail_shape)
        return pl.BlockSpec(block, lambda b: (b,) + (0,) * (len(block) - 1))

    def param_spec(arr):
        shape = arr.shape
        return pl.BlockSpec(shape, lambda b: (0,) * len(shape))

    out_shape = (
        jax.ShapeDtypeStruct((Bn, Tn, Dn), jnp.float32),            # x_out
        jax.ShapeDtypeStruct((Bn, n_head, Tn, Tn), jnp.float32),    # attn probs
    )

    return pl.pallas_call(
        encoder_block_kernel,
        grid=grid,
        in_specs=[
            data_spec((Tn, Dn)),            # x
            data_spec((Tn, Tn)),            # mask
            param_spec(gammas), param_spec(betas),
            param_spec(w_qkv), param_spec(b_qkv),
            param_spec(wo), param_spec(bo),
            param_spec(w1), param_spec(b1),
            param_spec(w2), param_spec(b2),
        ],
        out_specs=[
            data_spec((Tn, Dn)),            # x_out
            data_spec((n_head, Tn, Tn)),    # attn
        ],
        out_shape=out_shape,
        compiler_params=pltpu.CompilerParams(dimension_semantics=("parallel",)),
    )(x, mask, gammas, betas, w_qkv, b_qkv, wo, bo, w1, b1, w2, b2)


# ----------------- pure-JAX reference (for correctness check) -----------------
def _ref_layer_norm(v, g, b):
    mu = jnp.mean(v, axis=-1, keepdims=True)
    var = jnp.mean((v - mu) ** 2, axis=-1, keepdims=True)
    return (v - mu) * jax.lax.rsqrt(var + EPS) * g + b


def _ref_mha(xn, W, bvec, mask, n_head):
    Bn, Tn, Dn = xn.shape
    d_k = Dn // n_head
    q = xn @ W[0] + bvec[0]
    k = xn @ W[1] + bvec[1]
    v = xn @ W[2] + bvec[2]
    qh = q.reshape(Bn, Tn, n_head, d_k).transpose(0, 2, 1, 3)
    kh = k.reshape(Bn, Tn, n_head, d_k).transpose(0, 2, 1, 3)
    vh = v.reshape(Bn, Tn, n_head, d_k).transpose(0, 2, 1, 3)
    s = jnp.einsum('bhtd,bhsd->bhts', qh, kh) / math.sqrt(d_k)
    s = jnp.where(mask[:, None] == 0, NEG, s)
    p = jax.nn.softmax(s, axis=-1)
    o = jnp.einsum('bhts,bhsd->bhtd', p, vh)
    o = o.transpose(0, 2, 1, 3).reshape(Bn, Tn, Dn)
    return o @ W[3] + bvec[3], p


def reference(x, mask, params, n_head=N_HEAD):
    gammas, betas, wa, ba, w1, b1, w2, b2 = params
    xn = _ref_layer_norm(x, gammas[0], betas[0])
    sa, attn = _ref_mha(xn, wa, ba, mask, n_head)
    x = sa + x
    xn = _ref_layer_norm(x, gammas[1], betas[1])
    x = jnp.maximum(xn @ w1 + b1[0], 0.0) @ w2 + b2[0] + x
    return x, attn


# ----------------------------------- main -----------------------------------
if __name__ == "__main__":
    key = jax.random.PRNGKey(0)
    ks = jax.random.split(key, 10)

    x = jax.random.normal(ks[0], (B, T, D_MODEL), jnp.float32)

    # key-padding mask: batch 0 keeps all T positions, batch 1 masks last 3
    lengths = jnp.array([T, T - 3])
    valid = (jnp.arange(T)[None, :] < lengths[:, None]).astype(jnp.float32)  # [B,T]
    mask = jnp.broadcast_to(valid[:, None, :], (B, T, T))

    scale = 0.1
    gammas = 1.0 + scale * jax.random.normal(ks[1], (2, D_MODEL), jnp.float32)
    betas = scale * jax.random.normal(ks[2], (2, D_MODEL), jnp.float32)
    wa = scale * jax.random.normal(ks[3], (4, D_MODEL, D_MODEL), jnp.float32)
    ba = scale * jax.random.normal(ks[4], (4, D_MODEL), jnp.float32)
    w1 = scale * jax.random.normal(ks[5], (D_MODEL, D_FF), jnp.float32)
    b1 = scale * jax.random.normal(ks[6], (1, D_FF), jnp.float32)
    w2 = scale * jax.random.normal(ks[7], (D_FF, D_MODEL), jnp.float32)
    b2 = scale * jax.random.normal(ks[8], (1, D_MODEL), jnp.float32)
    params = (gammas, betas, wa, ba, w1, b1, w2, b2)

    x_out, attn = jax.block_until_ready(encoder_block(x, mask, params))

    x_ref, attn_ref = reference(x, mask, params)
    assert x_out.shape == (B, T, D_MODEL)
    assert attn.shape == (B, N_HEAD, T, T)
    assert jnp.allclose(x_out, x_ref, atol=2e-3, rtol=2e-3), \
        float(jnp.abs(x_out - x_ref).max())
    assert jnp.allclose(attn, attn_ref, atol=2e-3, rtol=2e-3), \
        float(jnp.abs(attn - attn_ref).max())

    print("KERNEL_OK")
</pallas_src>

<mosaic_0001>
module attributes {stable_mosaic.version = 11 : i64} {
  func.func @encoder_block_kernel(%arg0: i32, %arg1: memref<1x8x32xf32, #tpu.memory_space<vmem>>, %arg2: memref<1x8x8xf32, #tpu.memory_space<vmem>>, %arg3: memref<2x32xf32, #tpu.memory_space<vmem>>, %arg4: memref<2x32xf32, #tpu.memory_space<vmem>>, %arg5: memref<3x4x32x8xf32, #tpu.memory_space<vmem>>, %arg6: memref<3x4x1x8xf32, #tpu.memory_space<vmem>>, %arg7: memref<4x8x32xf32, #tpu.memory_space<vmem>>, %arg8: memref<1x32xf32, #tpu.memory_space<vmem>>, %arg9: memref<32x64xf32, #tpu.memory_space<vmem>>, %arg10: memref<1x64xf32, #tpu.memory_space<vmem>>, %arg11: memref<64x32xf32, #tpu.memory_space<vmem>>, %arg12: memref<1x32xf32, #tpu.memory_space<vmem>>, %arg13: memref<1x8x32xf32, #tpu.memory_space<vmem>>, %arg14: memref<1x4x8x8xf32, #tpu.memory_space<vmem>>) attributes {dimension_semantics = [#tpu.dimension_semantics<parallel>], iteration_bounds = array<i64: 2>, scalar_prefetch = 0 : i64, scratch_operands = 0 : i64, tpu.core_type = #tpu.core_type<tc>, window_params = [{transform_indices = @transform_0, window_bounds = array<i64: 1, 8, 32>}, {transform_indices = @transform_1, window_bounds = array<i64: 1, 8, 8>}, {pipeline_mode = #tpu.pipeline_mode<synchronous>, transform_indices = @transform_2, window_bounds = array<i64: 2, 32>}, {pipeline_mode = #tpu.pipeline_mode<synchronous>, transform_indices = @transform_3, window_bounds = array<i64: 2, 32>}, {pipeline_mode = #tpu.pipeline_mode<synchronous>, transform_indices = @transform_4, window_bounds = array<i64: 3, 4, 32, 8>}, {pipeline_mode = #tpu.pipeline_mode<synchronous>, transform_indices = @transform_5, window_bounds = array<i64: 3, 4, 1, 8>}, {pipeline_mode = #tpu.pipeline_mode<synchronous>, transform_indices = @transform_6, window_bounds = array<i64: 4, 8, 32>}, {pipeline_mode = #tpu.pipeline_mode<synchronous>, transform_indices = @transform_7, window_bounds = array<i64: 1, 32>}, {pipeline_mode = #tpu.pipeline_mode<synchronous>, transform_indices = @transform_8, window_bounds = array<i64: 32, 64>}, {pipeline_mode = #tpu.pipeline_mode<synchronous>, transform_indices = @transform_9, window_bounds = array<i64: 1, 64>}, {pipeline_mode = #tpu.pipeline_mode<synchronous>, transform_indices = @transform_10, window_bounds = array<i64: 64, 32>}, {pipeline_mode = #tpu.pipeline_mode<synchronous>, transform_indices = @transform_11, window_bounds = array<i64: 1, 32>}, {transform_indices = @transform_12, window_bounds = array<i64: 1, 8, 32>}, {transform_indices = @transform_13, window_bounds = array<i64: 1, 4, 8, 8>}]} {
    %c0 = arith.constant 0 : index
    %c0_0 = arith.constant 0 : index
    %c0_1 = arith.constant 0 : index
    %0 = vector.load %arg1[%c0, %c0_0, %c0_1] : memref<1x8x32xf32, #tpu.memory_space<vmem>>, vector<1x8x32xf32>
    %1 = vector.shape_cast %0 : vector<1x8x32xf32> to vector<8x32xf32>
    %cst = arith.constant dense<0.000000e+00> : vector<8xf32>
    %2 = vector.multi_reduction <add>, %1, %cst [1] : vector<8x32xf32> to vector<8xf32>
    %3 = vector.shape_cast %2 : vector<8xf32> to vector<8x1xf32>
    %cst_2 = arith.constant 3.200000e+01 : f32
    %4 = vector.broadcast %cst_2 : f32 to vector<8x1xf32>
    %5 = arith.divf %3, %4 : vector<8x1xf32>
    %6 = vector.broadcast %5 : vector<8x1xf32> to vector<8x32xf32>
    %7 = arith.subf %1, %6 : vector<8x32xf32>
    %8 = arith.mulf %7, %7 : vector<8x32xf32>
    %cst_3 = arith.constant dense<0.000000e+00> : vector<8xf32>
    %9 = vector.multi_reduction <add>, %8, %cst_3 [1] : vector<8x32xf32> to vector<8xf32>
    %10 = vector.shape_cast %9 : vector<8xf32> to vector<8x1xf32>
    %cst_4 = arith.constant 3.200000e+01 : f32
    %11 = vector.broadcast %cst_4 : f32 to vector<8x1xf32>
    %12 = arith.divf %10, %11 : vector<8x1xf32>
    %13 = vector.broadcast %5 : vector<8x1xf32> to vector<8x32xf32>
    %14 = arith.subf %1, %13 : vector<8x32xf32>
    %cst_5 = arith.constant 9.99999974E-6 : f32
    %15 = vector.broadcast %cst_5 : f32 to vector<8x1xf32>
    %16 = arith.addf %12, %15 : vector<8x1xf32>
    %17 = math.rsqrt %16 : vector<8x1xf32>
    %18 = vector.broadcast %17 : vector<8x1xf32> to vector<8x32xf32>
    %19 = arith.mulf %14, %18 : vector<8x32xf32>
    %c0_6 = arith.constant 0 : index
    %c0_7 = arith.constant 0 : index
    %20 = vector.load %arg3[%c0_6, %c0_7] : memref<2x32xf32, #tpu.memory_space<vmem>>, vector<1x32xf32>
    %21 = vector.shape_cast %20 : vector<1x32xf32> to vector<32xf32>
    %22 = vector.shape_cast %21 : vector<32xf32> to vector<1x32xf32>
    %23 = vector.broadcast %22 : vector<1x32xf32> to vector<8x32xf32>
    %24 = arith.mulf %19, %23 : vector<8x32xf32>
    %c0_8 = arith.constant 0 : index
    %c0_9 = arith.constant 0 : index
    %25 = vector.load %arg4[%c0_8, %c0_9] : memref<2x32xf32, #tpu.memory_space<vmem>>, vector<1x32xf32>
    %26 = vector.shape_cast %25 : vector<1x32xf32> to vector<32xf32>
    %27 = vector.shape_cast %26 : vector<32xf32> to vector<1x32xf32>
    %28 = vector.broadcast %27 : vector<1x32xf32> to vector<8x32xf32>
    %29 = arith.addf %24, %28 : vector<8x32xf32>
    %30 = vector.shape_cast %29 : vector<8x32xf32> to vector<1x8x32xf32>
    %31 = vector.shape_cast %30 : vector<1x8x32xf32> to vector<1x8x32xf32>
    %32 = vector.broadcast %31 : vector<1x8x32xf32> to vector<4x8x32xf32>
    %c0_10 = arith.constant 0 : index
    %c0_11 = arith.constant 0 : index
    %c0_12 = arith.constant 0 : index
    %c0_13 = arith.constant 0 : index
    %33 = vector.load %arg5[%c0_10, %c0_11, %c0_12, %c0_13] : memref<3x4x32x8xf32, #tpu.memory_space<vmem>>, vector<1x4x32x8xf32>
    %34 = vector.shape_cast %33 : vector<1x4x32x8xf32> to vector<4x32x8xf32>
    "tpu.trace_start"() <{level = 10 : i32, message = "hnd,hdk->hnk"}> : () -> ()
    %cst_14 = arith.constant dense<0.000000e+00> : vector<4x8x8xf32>
    %35 = tpu.matmul %32, %34, %cst_14 {dimension_numbers = #tpu.dot_dimension_numbers<[2], [1], [1], [2], [0, 0, 0, 1, 1, 2], [0], [0]>} : vector<4x8x32xf32>, vector<4x32x8xf32>, vector<4x8x8xf32> -> vector<4x8x8xf32>
    "tpu.trace_stop"() : () -> ()
    %c0_15 = arith.constant 0 : index
    %c0_16 = arith.constant 0 : index
    %c0_17 = arith.constant 0 : index
    %c0_18 = arith.constant 0 : index
    %36 = vector.load %arg6[%c0_15, %c0_16, %c0_17, %c0_18] : memref<3x4x1x8xf32, #tpu.memory_space<vmem>>, vector<1x4x1x8xf32>
    %37 = vector.shape_cast %36 : vector<1x4x1x8xf32> to vector<4x1x8xf32>
    %38 = vector.broadcast %37 : vector<4x1x8xf32> to vector<4x8x8xf32>
    %39 = arith.addf %35, %38 : vector<4x8x8xf32>
    %cst_19 = arith.constant 0.353553385 : f32
    %40 = vector.broadcast %cst_19 : f32 to vector<4x8x8xf32>
    %41 = arith.mulf %39, %40 : vector<4x8x8xf32>
    %c1 = arith.constant 1 : index
    %c0_20 = arith.constant 0 : index
    %c0_21 = arith.constant 0 : index
    %c0_22 = arith.constant 0 : index
    %42 = vector.load %arg5[%c1, %c0_20, %c0_21, %c0_22] : memref<3x4x32x8xf32, #tpu.memory_space<vmem>>, vector<1x4x32x8xf32>
    %43 = vector.shape_cast %42 : vector<1x4x32x8xf32> to vector<4x32x8xf32>
    "tpu.trace_start"() <{level = 10 : i32, message = "hnd,hdk->hnk"}> : () -> ()
    %cst_23 = arith.constant dense<0.000000e+00> : vector<4x8x8xf32>
    %44 = tpu.matmul %32, %43, %cst_23 {dimension_numbers = #tpu.dot_dimension_numbers<[2], [1], [1], [2], [0, 0, 0, 1, 1, 2], [0], [0]>} : vector<4x8x32xf32>, vector<4x32x8xf32>, vector<4x8x8xf32> -> vector<4x8x8xf32>
    "tpu.trace_stop"() : () -> ()
    %c1_24 = arith.constant 1 : index
    %c0_25 = arith.constant 0 : index
    %c0_26 = arith.constant 0 : index
    %c0_27 = arith.constant 0 : index
    %45 = vector.load %arg6[%c1_24, %c0_25, %c0_26, %c0_27] : memref<3x4x1x8xf32, #tpu.memory_space<vmem>>, vector<1x4x1x8xf32>
    %46 = vector.shape_cast %45 : vector<1x4x1x8xf32> to vector<4x1x8xf32>
    %47 = vector.broadcast %46 : vector<4x1x8xf32> to vector<4x8x8xf32>
    %48 = arith.addf %44, %47 : vector<4x8x8xf32>
    %c2 = arith.constant 2 : index
    %c0_28 = arith.constant 0 : index
    %c0_29 = arith.constant 0 : index
    %c0_30 = arith.constant 0 : index
    %49 = vector.load %arg5[%c2, %c0_28, %c0_29, %c0_30] : memref<3x4x32x8xf32, #tpu.memory_space<vmem>>, vector<1x4x32x8xf32>
    %50 = vector.shape_cast %49 : vector<1x4x32x8xf32> to vector<4x32x8xf32>
    "tpu.trace_start"() <{level = 10 : i32, message = "hnd,hdk->hnk"}> : () -> ()
    %cst_31 = arith.constant dense<0.000000e+00> : vector<4x8x8xf32>
    %51 = tpu.matmul %32, %50, %cst_31 {dimension_numbers = #tpu.dot_dimension_numbers<[2], [1], [1], [2], [0, 0, 0, 1, 1, 2], [0], [0]>} : vector<4x8x32xf32>, vector<4x32x8xf32>, vector<4x8x8xf32> -> vector<4x8x8xf32>
    "tpu.trace_stop"() : () -> ()
    %c2_32 = arith.constant 2 : index
    %c0_33 = arith.constant 0 : index
    %c0_34 = arith.constant 0 : index
    %c0_35 = arith.constant 0 : index
    %52 = vector.load %arg6[%c2_32, %c0_33, %c0_34, %c0_35] : memref<3x4x1x8xf32, #tpu.memory_space<vmem>>, vector<1x4x1x8xf32>
    %53 = vector.shape_cast %52 : vector<1x4x1x8xf32> to vector<4x1x8xf32>
    %54 = vector.broadcast %53 : vector<4x1x8xf32> to vector<4x8x8xf32>
    %55 = arith.addf %51, %54 : vector<4x8x8xf32>
    %c0_36 = arith.constant 0 : index
    %c0_37 = arith.constant 0 : index
    %c0_38 = arith.constant 0 : index
    %56 = vector.load %arg2[%c0_36, %c0_37, %c0_38] : memref<1x8x8xf32, #tpu.memory_space<vmem>>, vector<1x8x8xf32>
    "tpu.trace_start"() <{level = 10 : i32, message = "hqd,hkd->hqk"}> : () -> ()
    %cst_39 = arith.constant dense<0.000000e+00> : vector<4x8x8xf32>
    %57 = tpu.matmul %41, %48, %cst_39 {dimension_numbers = #tpu.dot_dimension_numbers<[2], [2], [1], [1], [0, 0, 0, 1, 1, 1], [0], [0]>} : vector<4x8x8xf32>, vector<4x8x8xf32>, vector<4x8x8xf32> -> vector<4x8x8xf32>
    "tpu.trace_stop"() : () -> ()
    %58 = vector.shape_cast %56 : vector<1x8x8xf32> to vector<8x8xf32>
    %59 = vector.shape_cast %58 : vector<8x8xf32> to vector<1x8x8xf32>
    %cst_40 = arith.constant 0.000000e+00 : f32
    %60 = vector.broadcast %cst_40 : f32 to vector<1x8x8xf32>
    %61 = arith.cmpf oeq, %59, %60 : vector<1x8x8xf32>
    %cst_41 = arith.constant -1.000000e+09 : f32
    %62 = vector.shape_cast %61 : vector<1x8x8xi1> to vector<1x8x8xi1>
    %63 = vector.broadcast %62 : vector<1x8x8xi1> to vector<4x8x8xi1>
    %64 = vector.broadcast %cst_41 : f32 to vector<4x8x8xf32>
    %65 = arith.select %63, %64, %57 : vector<4x8x8xi1>, vector<4x8x8xf32>
    %cst_42 = arith.constant dense<0xFF800000> : vector<4x8xf32>
    %66 = vector.multi_reduction <maximumf>, %65, %cst_42 [2] : vector<4x8x8xf32> to vector<4x8xf32>
    %67 = vector.shape_cast %66 : vector<4x8xf32> to vector<4x8x1xf32>
    %68 = vector.broadcast %67 : vector<4x8x1xf32> to vector<4x8x8xf32>
    %69 = arith.subf %65, %68 : vector<4x8x8xf32>
    %70 = math.exp %69 : vector<4x8x8xf32>
    %cst_43 = arith.constant dense<0.000000e+00> : vector<4x8xf32>
    %71 = vector.multi_reduction <add>, %70, %cst_43 [2] : vector<4x8x8xf32> to vector<4x8xf32>
    %72 = vector.shape_cast %71 : vector<4x8xf32> to vector<4x8x1xf32>
    %73 = tpu.reciprocal %72 {approx = true} : vector<4x8x1xf32> -> vector<4x8x1xf32>
    %74 = vector.broadcast %73 : vector<4x8x1xf32> to vector<4x8x8xf32>
    %75 = arith.mulf %70, %74 : vector<4x8x8xf32>
    "tpu.trace_start"() <{level = 10 : i32, message = "hqk,hkd->hqd"}> : () -> ()
    %cst_44 = arith.constant dense<0.000000e+00> : vector<4x8x8xf32>
    %76 = tpu.matmul %75, %55, %cst_44 {dimension_numbers = #tpu.dot_dimension_numbers<[2], [1], [1], [2], [0, 0, 0, 1, 1, 2], [0], [0]>} : vector<4x8x8xf32>, vector<4x8x8xf32>, vector<4x8x8xf32> -> vector<4x8x8xf32>
    "tpu.trace_stop"() : () -> ()
    %77 = vector.shape_cast %75 : vector<4x8x8xf32> to vector<1x4x8x8xf32>
    %c0_45 = arith.constant 0 : index
    %c0_46 = arith.constant 0 : index
    %c0_47 = arith.constant 0 : index
    %78 = vector.load %arg7[%c0_45, %c0_46, %c0_47] : memref<4x8x32xf32, #tpu.memory_space<vmem>>, vector<4x8x32xf32>
    "tpu.trace_start"() <{level = 10 : i32, message = "hnk,hkm->hnm"}> : () -> ()
    %cst_48 = arith.constant dense<0.000000e+00> : vector<4x8x32xf32>
    %79 = tpu.matmul %76, %78, %cst_48 {dimension_numbers = #tpu.dot_dimension_numbers<[2], [1], [1], [2], [0, 0, 0, 1, 1, 2], [0], [0]>} : vector<4x8x8xf32>, vector<4x8x32xf32>, vector<4x8x32xf32> -> vector<4x8x32xf32>
    "tpu.trace_stop"() : () -> ()
    %80 = vector.extract_strided_slice %79 {offsets = [0, 0, 0], sizes = [1, 8, 32], strides = [1, 1, 1]} : vector<4x8x32xf32> to vector<1x8x32xf32>
    %81 = vector.shape_cast %80 : vector<1x8x32xf32> to vector<8x32xf32>
    %82 = vector.extract_strided_slice %79 {offsets = [1, 0, 0], sizes = [1, 8, 32], strides = [1, 1, 1]} : vector<4x8x32xf32> to vector<1x8x32xf32>
    %83 = vector.shape_cast %82 : vector<1x8x32xf32> to vector<8x32xf32>
    %84 = vector.extract_strided_slice %79 {offsets = [2, 0, 0], sizes = [1, 8, 32], strides = [1, 1, 1]} : vector<4x8x32xf32> to vector<1x8x32xf32>
    %85 = vector.shape_cast %84 : vector<1x8x32xf32> to vector<8x32xf32>
    %86 = vector.extract_strided_slice %79 {offsets = [3, 0, 0], sizes = [1, 8, 32], strides = [1, 1, 1]} : vector<4x8x32xf32> to vector<1x8x32xf32>
    %87 = vector.shape_cast %86 : vector<1x8x32xf32> to vector<8x32xf32>
    %88 = arith.addf %81, %83 : vector<8x32xf32>
    %89 = arith.addf %88, %85 : vector<8x32xf32>
    %90 = arith.addf %89, %87 : vector<8x32xf32>
    %c0_49 = arith.constant 0 : index
    %c0_50 = arith.constant 0 : index
    %91 = vector.load %arg8[%c0_49, %c0_50] : memref<1x32xf32, #tpu.memory_space<vmem>>, vector<1x32xf32>
    %92 = vector.shape_cast %91 : vector<1x32xf32> to vector<32xf32>
    %93 = vector.shape_cast %92 : vector<32xf32> to vector<1x32xf32>
    %94 = vector.broadcast %93 : vector<1x32xf32> to vector<8x32xf32>
    %95 = arith.addf %90, %94 : vector<8x32xf32>
    %96 = arith.addf %95, %1 : vector<8x32xf32>
    %cst_51 = arith.constant dense<0.000000e+00> : vector<8xf32>
    %97 = vector.multi_reduction <add>, %96, %cst_51 [1] : vector<8x32xf32> to vector<8xf32>
    %98 = vector.shape_cast %97 : vector<8xf32> to vector<8x1xf32>
    %cst_52 = arith.constant 3.200000e+01 : f32
    %99 = vector.broadcast %cst_52 : f32 to vector<8x1xf32>
    %100 = arith.divf %98, %99 : vector<8x1xf32>
    %101 = vector.broadcast %100 : vector<8x1xf32> to vector<8x32xf32>
    %102 = arith.subf %96, %101 : vector<8x32xf32>
    %103 = arith.mulf %102, %102 : vector<8x32xf32>
    %cst_53 = arith.constant dense<0.000000e+00> : vector<8xf32>
    %104 = vector.multi_reduction <add>, %103, %cst_53 [1] : vector<8x32xf32> to vector<8xf32>
    %105 = vector.shape_cast %104 : vector<8xf32> to vector<8x1xf32>
    %cst_54 = arith.constant 3.200000e+01 : f32
    %106 = vector.broadcast %cst_54 : f32 to vector<8x1xf32>
    %107 = arith.divf %105, %106 : vector<8x1xf32>
    %108 = vector.broadcast %100 : vector<8x1xf32> to vector<8x32xf32>
    %109 = arith.subf %96, %108 : vector<8x32xf32>
    %cst_55 = arith.constant 9.99999974E-6 : f32
    %110 = vector.broadcast %cst_55 : f32 to vector<8x1xf32>
    %111 = arith.addf %107, %110 : vector<8x1xf32>
    %112 = math.rsqrt %111 : vector<8x1xf32>
    %113 = vector.broadcast %112 : vector<8x1xf32> to vector<8x32xf32>
    %114 = arith.mulf %109, %113 : vector<8x32xf32>
    %c1_56 = arith.constant 1 : index
    %c0_57 = arith.constant 0 : index
    %115 = vector.load %arg3[%c1_56, %c0_57] : memref<2x32xf32, #tpu.memory_space<vmem>>, vector<1x32xf32>
    %116 = vector.shape_cast %115 : vector<1x32xf32> to vector<32xf32>
    %117 = vector.shape_cast %116 : vector<32xf32> to vector<1x32xf32>
    %118 = vector.broadcast %117 : vector<1x32xf32> to vector<8x32xf32>
    %119 = arith.mulf %114, %118 : vector<8x32xf32>
    %c1_58 = arith.constant 1 : index
    %c0_59 = arith.constant 0 : index
    %120 = vector.load %arg4[%c1_58, %c0_59] : memref<2x32xf32, #tpu.memory_space<vmem>>, vector<1x32xf32>
    %121 = vector.shape_cast %120 : vector<1x32xf32> to vector<32xf32>
    %122 = vector.shape_cast %121 : vector<32xf32> to vector<1x32xf32>
    %123 = vector.broadcast %122 : vector<1x32xf32> to vector<8x32xf32>
    %124 = arith.addf %119, %123 : vector<8x32xf32>
    %c0_60 = arith.constant 0 : index
    %c0_61 = arith.constant 0 : index
    %125 = vector.load %arg9[%c0_60, %c0_61] : memref<32x64xf32, #tpu.memory_space<vmem>>, vector<32x64xf32>
    %cst_62 = arith.constant dense<0.000000e+00> : vector<8x64xf32>
    %126 = tpu.matmul %124, %125, %cst_62 {dimension_numbers = #tpu.dot_dimension_numbers<[1], [0], [0], [1], [0, 0, 1, 1], [], []>} : vector<8x32xf32>, vector<32x64xf32>, vector<8x64xf32> -> vector<8x64xf32>
    %c0_63 = arith.constant 0 : index
    %c0_64 = arith.constant 0 : index
    %127 = vector.load %arg10[%c0_63, %c0_64] : memref<1x64xf32, #tpu.memory_space<vmem>>, vector<1x64xf32>
    %128 = vector.shape_cast %127 : vector<1x64xf32> to vector<64xf32>
    %129 = vector.shape_cast %128 : vector<64xf32> to vector<1x64xf32>
    %130 = vector.broadcast %129 : vector<1x64xf32> to vector<8x64xf32>
    %131 = arith.addf %126, %130 : vector<8x64xf32>
    %cst_65 = arith.constant 0.000000e+00 : f32
    %132 = vector.broadcast %cst_65 : f32 to vector<8x64xf32>
    %133 = arith.maximumf %131, %132 : vector<8x64xf32>
    %c0_66 = arith.constant 0 : index
    %c0_67 = arith.constant 0 : index
    %134 = vector.load %arg11[%c0_66, %c0_67] : memref<64x32xf32, #tpu.memory_space<vmem>>, vector<64x32xf32>
    %cst_68 = arith.constant dense<0.000000e+00> : vector<8x32xf32>
    %135 = tpu.matmul %133, %134, %cst_68 {dimension_numbers = #tpu.dot_dimension_numbers<[1], [0], [0], [1], [0, 0, 1, 1], [], []>} : vector<8x64xf32>, vector<64x32xf32>, vector<8x32xf32> -> vector<8x32xf32>
    %c0_69 = arith.constant 0 : index
    %c0_70 = arith.constant 0 : index
    %136 = vector.load %arg12[%c0_69, %c0_70] : memref<1x32xf32, #tpu.memory_space<vmem>>, vector<1x32xf32>
    %137 = vector.shape_cast %136 : vector<1x32xf32> to vector<32xf32>
    %138 = vector.shape_cast %137 : vector<32xf32> to vector<1x32xf32>
    %139 = vector.broadcast %138 : vector<1x32xf32> to vector<8x32xf32>
    %140 = arith.addf %135, %139 : vector<8x32xf32>
    %141 = arith.addf %140, %96 : vector<8x32xf32>
    %142 = vector.shape_cast %141 : vector<8x32xf32> to vector<1x8x32xf32>
    %c0_71 = arith.constant 0 : index
    %c0_72 = arith.constant 0 : index
    %c0_73 = arith.constant 0 : index
    %143 = vector.load %arg13[%c0_71, %c0_72, %c0_73] : memref<1x8x32xf32, #tpu.memory_space<vmem>>, vector<1x8x32xf32>
    tpu.vector_store %arg13[%c0_71, %c0_72, %c0_73], %142 {strides = array<i32>} : memref<1x8x32xf32, #tpu.memory_space<vmem>>, vector<1x8x32xf32>,
    %c0_74 = arith.constant 0 : index
    %c0_75 = arith.constant 0 : index
    %c0_76 = arith.constant 0 : index
    %c0_77 = arith.constant 0 : index
    %144 = vector.load %arg14[%c0_74, %c0_75, %c0_76, %c0_77] : memref<1x4x8x8xf32, #tpu.memory_space<vmem>>, vector<1x4x8x8xf32>
    tpu.vector_store %arg14[%c0_74, %c0_75, %c0_76, %c0_77], %77 {strides = array<i32>} : memref<1x4x8x8xf32, #tpu.memory_space<vmem>>, vector<1x4x8x8xf32>,
    return
  }
  func.func @transform_0(%arg0: i32) -> (i32, i32, i32) {
    %c0_i32 = arith.constant 0 : i32
    %c0_i32_0 = arith.constant 0 : i32
    %c0_i32_1 = arith.constant 0 : i32
    return %arg0, %c0_i32, %c0_i32_0 : i32, i32, i32
  }
  func.func @transform_1(%arg0: i32) -> (i32, i32, i32) {
    %c0_i32 = arith.constant 0 : i32
    %c0_i32_0 = arith.constant 0 : i32
    %c0_i32_1 = arith.constant 0 : i32
    return %arg0, %c0_i32, %c0_i32_0 : i32, i32, i32
  }
  func.func @transform_2(%arg0: i32) -> (i32, i32) {
    %c0_i32 = arith.constant 0 : i32
    %c0_i32_0 = arith.constant 0 : i32
    %c0_i32_1 = arith.constant 0 : i32
    return %c0_i32, %c0_i32_0 : i32, i32
  }
  func.func @transform_3(%arg0: i32) -> (i32, i32) {
    %c0_i32 = arith.constant 0 : i32
    %c0_i32_0 = arith.constant 0 : i32
    %c0_i32_1 = arith.constant 0 : i32
    return %c0_i32, %c0_i32_0 : i32, i32
  }
  func.func @transform_4(%arg0: i32) -> (i32, i32, i32, i32) {
    %c0_i32 = arith.constant 0 : i32
    %c0_i32_0 = arith.constant 0 : i32
    %c0_i32_1 = arith.constant 0 : i32
    %c0_i32_2 = arith.constant 0 : i32
    %c0_i32_3 = arith.constant 0 : i32
    return %c0_i32, %c0_i32_0, %c0_i32_1, %c0_i32_2 : i32, i32, i32, i32
  }
  func.func @transform_5(%arg0: i32) -> (i32, i32, i32, i32) {
    %c0_i32 = arith.constant 0 : i32
    %c0_i32_0 = arith.constant 0 : i32
    %c0_i32_1 = arith.constant 0 : i32
    %c0_i32_2 = arith.constant 0 : i32
    %c0_i32_3 = arith.constant 0 : i32
    return %c0_i32, %c0_i32_0, %c0_i32_1, %c0_i32_2 : i32, i32, i32, i32
  }
  func.func @transform_6(%arg0: i32) -> (i32, i32, i32) {
    %c0_i32 = arith.constant 0 : i32
    %c0_i32_0 = arith.constant 0 : i32
    %c0_i32_1 = arith.constant 0 : i32
    %c0_i32_2 = arith.constant 0 : i32
    return %c0_i32, %c0_i32_0, %c0_i32_1 : i32, i32, i32
  }
  func.func @transform_7(%arg0: i32) -> (i32, i32) {
    %c0_i32 = arith.constant 0 : i32
    %c0_i32_0 = arith.constant 0 : i32
    %c0_i32_1 = arith.constant 0 : i32
    return %c0_i32, %c0_i32_0 : i32, i32
  }
  func.func @transform_8(%arg0: i32) -> (i32, i32) {
    %c0_i32 = arith.constant 0 : i32
    %c0_i32_0 = arith.constant 0 : i32
    %c0_i32_1 = arith.constant 0 : i32
    return %c0_i32, %c0_i32_0 : i32, i32
  }
  func.func @transform_9(%arg0: i32) -> (i32, i32) {
    %c0_i32 = arith.constant 0 : i32
    %c0_i32_0 = arith.constant 0 : i32
    %c0_i32_1 = arith.constant 0 : i32
    return %c0_i32, %c0_i32_0 : i32, i32
  }
  func.func @transform_10(%arg0: i32) -> (i32, i32) {
    %c0_i32 = arith.constant 0 : i32
    %c0_i32_0 = arith.constant 0 : i32
    %c0_i32_1 = arith.constant 0 : i32
    return %c0_i32, %c0_i32_0 : i32, i32
  }
  func.func @transform_11(%arg0: i32) -> (i32, i32) {
    %c0_i32 = arith.constant 0 : i32
    %c0_i32_0 = arith.constant 0 : i32
    %c0_i32_1 = arith.constant 0 : i32
    return %c0_i32, %c0_i32_0 : i32, i32
  }
  func.func @transform_12(%arg0: i32) -> (i32, i32, i32) {
    %c0_i32 = arith.constant 0 : i32
    %c0_i32_0 = arith.constant 0 : i32
    %c0_i32_1 = arith.constant 0 : i32
    return %arg0, %c0_i32, %c0_i32_0 : i32, i32, i32
  }
  func.func @transform_13(%arg0: i32) -> (i32, i32, i32, i32) {
    %c0_i32 = arith.constant 0 : i32
    %c0_i32_0 = arith.constant 0 : i32
    %c0_i32_1 = arith.constant 0 : i32
    %c0_i32_2 = arith.constant 0 : i32
    return %arg0, %c0_i32, %c0_i32_0, %c0_i32_1 : i32, i32, i32, i32
  }
}

</mosaic_0001>

<llo_original>
// kernel: tpu_custom_call.1
$region0: #{tpu_custom_call.1}
  #allocation0 [shape = 'u32[]', space=smem, size = 0x4, offset = 0x4, fixed_abs, tag = 'smem constant byte address 0x4 - core index']
  #allocation1 [shape = 'u32[144,128]{1,0:T(1,128)}', space=vmem, size = 0x12000, scoped, tag = 'internal scratch']
  %s0 = inlined_call_operand.vmem [shape: f32[2,8,32], index: 0, kind: input, shape index: {}]
  %s1 = inlined_call_operand.vmem [shape: f32[2,8,8], index: 1, kind: input, shape index: {}]
  %s2 = inlined_call_operand.vmem [shape: f32[2,32], index: 2, kind: input, shape index: {}]
  %s3 = inlined_call_operand.vmem [shape: f32[2,32], index: 3, kind: input, shape index: {}]
  %s4 = inlined_call_operand.vmem [shape: f32[3,4,32,8], index: 4, kind: input, shape index: {}]
  %s5 = inlined_call_operand.vmem [shape: f32[3,4,1,8], index: 5, kind: input, shape index: {}]
  %s6 = inlined_call_operand.vmem [shape: f32[4,8,32], index: 6, kind: input, shape index: {}]
  %s7 = inlined_call_operand.vmem [shape: f32[1,32], index: 7, kind: input, shape index: {}]
  %s8 = inlined_call_operand.vmem [shape: f32[32,64], index: 8, kind: input, shape index: {}]
  %s9 = inlined_call_operand.vmem [shape: f32[1,64], index: 9, kind: input, shape index: {}]
  %s10 = inlined_call_operand.vmem [shape: f32[64,32], index: 10, kind: input, shape index: {}]
  %s11 = inlined_call_operand.vmem [shape: f32[1,32], index: 11, kind: input, shape index: {}]
  %s12 = inlined_call_operand.hbm [shape: f32[2,8,32], index: 12, kind: output, shape index: {0}]
  %s13 = inlined_call_operand.hbm [shape: f32[2,4,8,8], index: 13, kind: output, shape index: {1}]
  %14 = xla_tuple %s12, %s13
  %s15 = sld [smem:[#allocation0]]
  $region89: #{tpu_custom_call.1} parent=0
    _
  %s17 = ssub.s32 1, %s15
  %s18 = scalar_select 0, %s17, %s15
  $region1: #{tpu_custom_call.1} parent=0
    #allocation2 [shape = 'u8[8192]{0}', space=vmem, size = 0x2000, scoped, tag = 'output window, operand 0']
    #allocation3 [shape = 's32[2]{0}', space=sflag, size = 0x8, scoped, tag = 'scoped memory for tpu_custom_call.1']
    #allocation4 [shape = 'u8[32768]{0}', space=vmem, size = 0x8000, scoped, tag = 'output window, operand 1']
    #allocation5 [shape = 's32[2]{0}', space=sflag, size = 0x8, scoped, tag = 'scoped memory for tpu_custom_call.1']
    %19 = vsyncpa [#allocation3], 0
    %s20 = scalar_lea.sflag [#allocation3], 1
    %21 = vsyncpa %s20, 0
    %22 = vsyncpa [#allocation5], 0
    %s23 = scalar_lea.sflag [#allocation5], 1
    %24 = vsyncpa %s23, 0
    loop: start=0, step=1, limit=4
    $region2: #{tpu_custom_call.1} parent=1 // loop_pre_header
      _
    $region3: #{tpu_custom_call.1} parent=1 // loop_header
      %s26 = sphi 0, %s30
      %p27 = scmp.ge.s32.totalorder %s26, 4
      %s36 = sphi 0, %s38
      %s39 = sphi 0, %s36
      %s40 = sphi 0, %s39
      %s56 = sphi 0, %s40
      %s62 = sphi 0, %s64
      %s65 = sphi 0, %s62
      %s66 = sphi 0, %s65
      %s82 = sphi 0, %s66
      %s86 = sphi 0, %s86
      %s88 = sphi 0, %s86
      %s89 = sphi 0, %s88
      %s103 = sphi 0, %s89
      %s107 = sphi 0, %s107
      %s109 = sphi 0, %s107
      %s110 = sphi 0, %s109
      %s124 = sphi 0, %s110
      %s128 = sphi 0, %s128
      %s130 = sphi 0, %s128
      %s131 = sphi 0, %s130
      %s145 = sphi 0, %s131
      %s149 = sphi 0, %s149
      %s151 = sphi 0, %s149
      %s152 = sphi 0, %s151
      %s166 = sphi 0, %s152
      %s170 = sphi 0, %s170
      %s172 = sphi 0, %s170
      %s173 = sphi 0, %s172
      %s187 = sphi 0, %s173
      %s191 = sphi 0, %s191
      %s193 = sphi 0, %s191
      %s194 = sphi 0, %s193
      %s208 = sphi 0, %s194
      %s212 = sphi 0, %s212
      %s214 = sphi 0, %s212
      %s215 = sphi 0, %s214
      %s229 = sphi 0, %s215
      %s233 = sphi 0, %s233
      %s235 = sphi 0, %s233
      %s236 = sphi 0, %s235
      %s250 = sphi 0, %s236
      %s254 = sphi 0, %s254
      %s256 = sphi 0, %s254
      %s257 = sphi 0, %s256
      %s271 = sphi 0, %s257
      %s275 = sphi 0, %s275
      %s277 = sphi 0, %s275
      %s278 = sphi 0, %s277
      %s292 = sphi 0, %s278
      %s298 = sphi 0, %s300
      %s301 = sphi 0, %s298
      %s302 = sphi 0, %s301
      %s318 = sphi 0, %s302
      %s324 = sphi 0, %s326
      %s327 = sphi 0, %s324
      %s328 = sphi 0, %s327
      %s344 = sphi 0, %s328
    $region4: #{tpu_custom_call.1} parent=1 // loop_header_branch
      %29 = sbr.rel (%p27) target = $region8
    $region5: #{tpu_custom_call.1} parent=1 // loop_body
      %s31 = ssub.s32 %s26, 1
      %s32 = ssub.s32 %s26, 2
      %s33 = sadd.s32 %s26, 1
      %s34 = ssub.s32 %s26, %s33
      %p35 = scmp.eq.s32.totalorder %s34, 0
      %s37 = sadd.s32 %s36, 1
      %s38 = scalar_select %p35, %s36, %s37
      %p41 = pneg %p35
      %p42 = scmp.eq.s32.totalorder %s26, 1
      %p43 = por %p41, %p42
      %p44 = scmp.ne.s32.totalorder %s36, %s39
      %p45 = scmp.eq.s32.totalorder %s26, 0
      %p46 = por %p44, %p45
      %p47 = scmp.ne.s32.totalorder %s36, %s39
      %p48 = scmp.eq.s32.totalorder %s31, 1
      %p49 = por %p47, %p48
      %p50 = scmp.ne.s32.totalorder %s39, %s40
      %p51 = scmp.eq.s32.totalorder %s31, 0
      %p52 = por %p50, %p51
      %p53 = scmp.ne.s32.totalorder %s39, %s40
      %p54 = scmp.eq.s32.totalorder %s32, 1
      %p55 = por %p53, %p54
      %p57 = scmp.ne.s32.totalorder %s40, %s56
      %p58 = scmp.eq.s32.totalorder %s32, 0
      %p59 = por %p57, %p58
      %s60 = ssub.s32 %s26, %s33
      %p61 = scmp.eq.s32.totalorder %s60, 0
      %s63 = sadd.s32 %s62, 1
      %s64 = scalar_select %p61, %s62, %s63
      %p67 = pneg %p61
      %p68 = scmp.eq.s32.totalorder %s26, 1
      %p69 = por %p67, %p68
      %p70 = scmp.ne.s32.totalorder %s62, %s65
      %p71 = scmp.eq.s32.totalorder %s26, 0
      %p72 = por %p70, %p71
      %p73 = scmp.ne.s32.totalorder %s62, %s65
      %p74 = scmp.eq.s32.totalorder %s31, 1
      %p75 = por %p73, %p74
      %p76 = scmp.ne.s32.totalorder %s65, %s66
      %p77 = scmp.eq.s32.totalorder %s31, 0
      %p78 = por %p76, %p77
      %p79 = scmp.ne.s32.totalorder %s65, %s66
      %p80 = scmp.eq.s32.totalorder %s32, 1
      %p81 = por %p79, %p80
      %p83 = scmp.ne.s32.totalorder %s66, %s82
      %p84 = scmp.eq.s32.totalorder %s32, 0
      %p85 = por %p83, %p84
      %s87 = sadd.s32 %s86, 1
      %p90 = scmp.eq.s32.totalorder %s26, 1
      %p91 = scmp.ne.s32.totalorder %s86, %s88
      %p92 = scmp.eq.s32.totalorder %s26, 0
      %p93 = por %p91, %p92
      %p94 = scmp.ne.s32.totalorder %s86, %s88
      %p95 = scmp.eq.s32.totalorder %s31, 1
      %p96 = por %p94, %p95
      %p97 = scmp.ne.s32.totalorder %s88, %s89
      %p98 = scmp.eq.s32.totalorder %s31, 0
      %p99 = por %p97, %p98
      %p100 = scmp.ne.s32.totalorder %s88, %s89
      %p101 = scmp.eq.s32.totalorder %s32, 1
      %p102 = por %p100, %p101
      %p104 = scmp.ne.s32.totalorder %s89, %s103
      %p105 = scmp.eq.s32.totalorder %s32, 0
      %p106 = por %p104, %p105
      %s108 = sadd.s32 %s107, 1
      %p111 = scmp.eq.s32.totalorder %s26, 1
      %p112 = scmp.ne.s32.totalorder %s107, %s109
      %p113 = scmp.eq.s32.totalorder %s26, 0
      %p114 = por %p112, %p113
      %p115 = scmp.ne.s32.totalorder %s107, %s109
      %p116 = scmp.eq.s32.totalorder %s31, 1
      %p117 = por %p115, %p116
      %p118 = scmp.ne.s32.totalorder %s109, %s110
      %p119 = scmp.eq.s32.totalorder %s31, 0
      %p120 = por %p118, %p119
      %p121 = scmp.ne.s32.totalorder %s109, %s110
      %p122 = scmp.eq.s32.totalorder %s32, 1
      %p123 = por %p121, %p122
      %p125 = scmp.ne.s32.totalorder %s110, %s124
      %p126 = scmp.eq.s32.totalorder %s32, 0
      %p127 = por %p125, %p126
      %s129 = sadd.s32 %s128, 1
      %p132 = scmp.eq.s32.totalorder %s26, 1
      %p133 = scmp.ne.s32.totalorder %s128, %s130
      %p134 = scmp.eq.s32.totalorder %s26, 0
      %p135 = por %p133, %p134
      %p136 = scmp.ne.s32.totalorder %s128, %s130
      %p137 = scmp.eq.s32.totalorder %s31, 1
      %p138 = por %p136, %p137
      %p139 = scmp.ne.s32.totalorder %s130, %s131
      %p140 = scmp.eq.s32.totalorder %s31, 0
      %p141 = por %p139, %p140
      %p142 = scmp.ne.s32.totalorder %s130, %s131
      %p143 = scmp.eq.s32.totalorder %s32, 1
      %p144 = por %p142, %p143
      %p146 = scmp.ne.s32.totalorder %s131, %s145
      %p147 = scmp.eq.s32.totalorder %s32, 0
      %p148 = por %p146, %p147
      %s150 = sadd.s32 %s149, 1
      %p153 = scmp.eq.s32.totalorder %s26, 1
      %p154 = scmp.ne.s32.totalorder %s149, %s151
      %p155 = scmp.eq.s32.totalorder %s26, 0
      %p156 = por %p154, %p155
      %p157 = scmp.ne.s32.totalorder %s149, %s151
      %p158 = scmp.eq.s32.totalorder %s31, 1
      %p159 = por %p157, %p158
      %p160 = scmp.ne.s32.totalorder %s151, %s152
      %p161 = scmp.eq.s32.totalorder %s31, 0
      %p162 = por %p160, %p161
      %p163 = scmp.ne.s32.totalorder %s151, %s152
      %p164 = scmp.eq.s32.totalorder %s32, 1
      %p165 = por %p163, %p164
      %p167 = scmp.ne.s32.totalorder %s152, %s166
      %p168 = scmp.eq.s32.totalorder %s32, 0
      %p169 = por %p167, %p168
      %s171 = sadd.s32 %s170, 1
      %p174 = scmp.eq.s32.totalorder %s26, 1
      %p175 = scmp.ne.s32.totalorder %s170, %s172
      %p176 = scmp.eq.s32.totalorder %s26, 0
      %p177 = por %p175, %p176
      %p178 = scmp.ne.s32.totalorder %s170, %s172
      %p179 = scmp.eq.s32.totalorder %s31, 1
      %p180 = por %p178, %p179
      %p181 = scmp.ne.s32.totalorder %s172, %s173
      %p182 = scmp.eq.s32.totalorder %s31, 0
      %p183 = por %p181, %p182
      %p184 = scmp.ne.s32.totalorder %s172, %s173
      %p185 = scmp.eq.s32.totalorder %s32, 1
      %p186 = por %p184, %p185
      %p188 = scmp.ne.s32.totalorder %s173, %s187
      %p189 = scmp.eq.s32.totalorder %s32, 0
      %p190 = por %p188, %p189
      %s192 = sadd.s32 %s191, 1
      %p195 = scmp.eq.s32.totalorder %s26, 1
      %p196 = scmp.ne.s32.totalorder %s191, %s193
      %p197 = scmp.eq.s32.totalorder %s26, 0
      %p198 = por %p196, %p197
      %p199 = scmp.ne.s32.totalorder %s191, %s193
      %p200 = scmp.eq.s32.totalorder %s31, 1
      %p201 = por %p199, %p200
      %p202 = scmp.ne.s32.totalorder %s193, %s194
      %p203 = scmp.eq.s32.totalorder %s31, 0
      %p204 = por %p202, %p203
      %p205 = scmp.ne.s32.totalorder %s193, %s194
      %p206 = scmp.eq.s32.totalorder %s32, 1
      %p207 = por %p205, %p206
      %p209 = scmp.ne.s32.totalorder %s194, %s208
      %p210 = scmp.eq.s32.totalorder %s32, 0
      %p211 = por %p209, %p210
      %s213 = sadd.s32 %s212, 1
      %p216 = scmp.eq.s32.totalorder %s26, 1
      %p217 = scmp.ne.s32.totalorder %s212, %s214
      %p218 = scmp.eq.s32.totalorder %s26, 0
      %p219 = por %p217, %p218
      %p220 = scmp.ne.s32.totalorder %s212, %s214
      %p221 = scmp.eq.s32.totalorder %s31, 1
      %p222 = por %p220, %p221
      %p223 = scmp.ne.s32.totalorder %s214, %s215
      %p224 = scmp.eq.s32.totalorder %s31, 0
      %p225 = por %p223, %p224
      %p226 = scmp.ne.s32.totalorder %s214, %s215
      %p227 = scmp.eq.s32.totalorder %s32, 1
      %p228 = por %p226, %p227
      %p230 = scmp.ne.s32.totalorder %s215, %s229
      %p231 = scmp.eq.s32.totalorder %s32, 0
      %p232 = por %p230, %p231
      %s234 = sadd.s32 %s233, 1
      %p237 = scmp.eq.s32.totalorder %s26, 1
      %p238 = scmp.ne.s32.totalorder %s233, %s235
      %p239 = scmp.eq.s32.totalorder %s26, 0
      %p240 = por %p238, %p239
      %p241 = scmp.ne.s32.totalorder %s233, %s235
      %p242 = scmp.eq.s32.totalorder %s31, 1
      %p243 = por %p241, %p242
      %p244 = scmp.ne.s32.totalorder %s235, %s236
      %p245 = scmp.eq.s32.totalorder %s31, 0
      %p246 = por %p244, %p245
      %p247 = scmp.ne.s32.totalorder %s235, %s236
      %p248 = scmp.eq.s32.totalorder %s32, 1
      %p249 = por %p247, %p248
      %p251 = scmp.ne.s32.totalorder %s236, %s250
      %p252 = scmp.eq.s32.totalorder %s32, 0
      %p253 = por %p251, %p252
      %s255 = sadd.s32 %s254, 1
      %p258 = scmp.eq.s32.totalorder %s26, 1
      %p259 = scmp.ne.s32.totalorder %s254, %s256
      %p260 = scmp.eq.s32.totalorder %s26, 0
      %p261 = por %p259, %p260
      %p262 = scmp.ne.s32.totalorder %s254, %s256
      %p263 = scmp.eq.s32.totalorder %s31, 1
      %p264 = por %p262, %p263
      %p265 = scmp.ne.s32.totalorder %s256, %s257
      %p266 = scmp.eq.s32.totalorder %s31, 0
      %p267 = por %p265, %p266
      %p268 = scmp.ne.s32.totalorder %s256, %s257
      %p269 = scmp.eq.s32.totalorder %s32, 1
      %p270 = por %p268, %p269
      %p272 = scmp.ne.s32.totalorder %s257, %s271
      %p273 = scmp.eq.s32.totalorder %s32, 0
      %p274 = por %p272, %p273
      %s276 = sadd.s32 %s275, 1
      %p279 = scmp.eq.s32.totalorder %s26, 1
      %p280 = scmp.ne.s32.totalorder %s275, %s277
      %p281 = scmp.eq.s32.totalorder %s26, 0
      %p282 = por %p280, %p281
      %p283 = scmp.ne.s32.totalorder %s275, %s277
      %p284 = scmp.eq.s32.totalorder %s31, 1
      %p285 = por %p283, %p284
      %p286 = scmp.ne.s32.totalorder %s277, %s278
      %p287 = scmp.eq.s32.totalorder %s31, 0
      %p288 = por %p286, %p287
      %p289 = scmp.ne.s32.totalorder %s277, %s278
      %p290 = scmp.eq.s32.totalorder %s32, 1
      %p291 = por %p289, %p290
      %p293 = scmp.ne.s32.totalorder %s278, %s292
      %p294 = scmp.eq.s32.totalorder %s32, 0
      %p295 = por %p293, %p294
      %s296 = ssub.s32 %s26, %s33
      %p297 = scmp.eq.s32.totalorder %s296, 0
      %s299 = sadd.s32 %s298, 1
      %s300 = scalar_select %p297, %s298, %s299
      %p303 = pneg %p297
      %p304 = scmp.eq.s32.totalorder %s26, 1
      %p305 = por %p303, %p304
      %p306 = scmp.ne.s32.totalorder %s298, %s301
      %p307 = scmp.eq.s32.totalorder %s26, 0
      %p308 = por %p306, %p307
      %p309 = scmp.ne.s32.totalorder %s298, %s301
      %p310 = scmp.eq.s32.totalorder %s31, 1
      %p311 = por %p309, %p310
      %p312 = scmp.ne.s32.totalorder %s301, %s302
      %p313 = scmp.eq.s32.totalorder %s31, 0
      %p314 = por %p312, %p313
      %p315 = scmp.ne.s32.totalorder %s301, %s302
      %p316 = scmp.eq.s32.totalorder %s32, 1
      %p317 = por %p315, %p316
      %p319 = scmp.ne.s32.totalorder %s302, %s318
      %p320 = scmp.eq.s32.totalorder %s32, 0
      %p321 = por %p319, %p320
      %s322 = ssub.s32 %s26, %s33
      %p323 = scmp.eq.s32.totalorder %s322, 0
      %s325 = sadd.s32 %s324, 1
      %s326 = scalar_select %p323, %s324, %s325
      %p329 = pneg %p323
      %p330 = scmp.eq.s32.totalorder %s26, 1
      %p331 = por %p329, %p330
      %p332 = scmp.ne.s32.totalorder %s324, %s327
      %p333 = scmp.eq.s32.totalorder %s26, 0
      %p334 = por %p332, %p333
      %p335 = scmp.ne.s32.totalorder %s324, %s327
      %p336 = scmp.eq.s32.totalorder %s31, 1
      %p337 = por %p335, %p336
      %p338 = scmp.ne.s32.totalorder %s327, %s328
      %p339 = scmp.eq.s32.totalorder %s31, 0
      %p340 = por %p338, %p339
      %p341 = scmp.ne.s32.totalorder %s327, %s328
      %p342 = scmp.eq.s32.totalorder %s32, 1
      %p343 = por %p341, %p342
      %p345 = scmp.ne.s32.totalorder %s328, %s344
      %p346 = scmp.eq.s32.totalorder %s32, 0
      %p347 = por %p345, %p346
      %p348 = scmp.le.s32.totalorder 1, %s26
      %p349 = scmp.lt.s32.totalorder %s26, 3
      %p350 = pnand %p348, %p349
      %p351 = pneg %p350
      // Predicated region
      $region9: #{tpu_custom_call.1} parent=5 // pred_check
        _
      $region10: #{tpu_custom_call.1} parent=5 // pred_check_branch
        %353 = sbr.rel (%p350) target = $region12
      $region11: #{tpu_custom_call.1} parent=5 // pred_region
        %s354 = ssub.s32 %s26, 1
        // Predicated region
        $region13: #{tpu_custom_call.1} parent=11 // pred_check
          %p355 = pneg %p99
        $region14: #{tpu_custom_call.1} parent=11 // pred_check_branch
          %357 = sbr.rel (%p355) target = $region16
        $region15: #{tpu_custom_call.1} parent=11 // pred_region
          _
        $region16: #{tpu_custom_call.1} parent=11 // pred_fallthru
          _
        // Predicated region
        $region17: #{tpu_custom_call.1} parent=11 // pred_check
          %p358 = pneg %p120
        $region18: #{tpu_custom_call.1} parent=11 // pred_check_branch
          %360 = sbr.rel (%p358) target = $region20
        $region19: #{tpu_custom_call.1} parent=11 // pred_region
          _
        $region20: #{tpu_custom_call.1} parent=11 // pred_fallthru
          _
        // Predicated region
        $region21: #{tpu_custom_call.1} parent=11 // pred_check
          %p361 = pneg %p141
        $region22: #{tpu_custom_call.1} parent=11 // pred_check_branch
          %363 = sbr.rel (%p361) target = $region24
        $region23: #{tpu_custom_call.1} parent=11 // pred_region
          _
        $region24: #{tpu_custom_call.1} parent=11 // pred_fallthru
          _
        // Predicated region
        $region25: #{tpu_custom_call.1} parent=11 // pred_check
          %p364 = pneg %p162
        $region26: #{tpu_custom_call.1} parent=11 // pred_check_branch
          %366 = sbr.rel (%p364) target = $region28
        $region27: #{tpu_custom_call.1} parent=11 // pred_region
          _
        $region28: #{tpu_custom_call.1} parent=11 // pred_fallthru
          _
        // Predicated region
        $region29: #{tpu_custom_call.1} parent=11 // pred_check
          %p367 = pneg %p183
        $region30: #{tpu_custom_call.1} parent=11 // pred_check_branch
          %369 = sbr.rel (%p367) target = $region32
        $region31: #{tpu_custom_call.1} parent=11 // pred_region
          _
        $region32: #{tpu_custom_call.1} parent=11 // pred_fallthru
          _
        // Predicated region
        $region33: #{tpu_custom_call.1} parent=11 // pred_check
          %p370 = pneg %p204
        $region34: #{tpu_custom_call.1} parent=11 // pred_check_branch
          %372 = sbr.rel (%p370) target = $region36
        $region35: #{tpu_custom_call.1} parent=11 // pred_region
          _
        $region36: #{tpu_custom_call.1} parent=11 // pred_fallthru
          _
        // Predicated region
        $region37: #{tpu_custom_call.1} parent=11 // pred_check
          %p373 = pneg %p225
        $region38: #{tpu_custom_call.1} parent=11 // pred_check_branch
          %375 = sbr.rel (%p373) target = $region40
        $region39: #{tpu_custom_call.1} parent=11 // pred_region
          _
        $region40: #{tpu_custom_call.1} parent=11 // pred_fallthru
          _
        // Predicated region
        $region41: #{tpu_custom_call.1} parent=11 // pred_check
          %p376 = pneg %p246
        $region42: #{tpu_custom_call.1} parent=11 // pred_check_branch
          %378 = sbr.rel (%p376) target = $region44
        $region43: #{tpu_custom_call.1} parent=11 // pred_region
          _
        $region44: #{tpu_custom_call.1} parent=11 // pred_fallthru
          _
        // Predicated region
        $region45: #{tpu_custom_call.1} parent=11 // pred_check
          %p379 = pneg %p267
        $region46: #{tpu_custom_call.1} parent=11 // pred_check_branch
          %381 = sbr.rel (%p379) target = $region48
        $region47: #{tpu_custom_call.1} parent=11 // pred_region
          _
        $region48: #{tpu_custom_call.1} parent=11 // pred_fallthru
          _
        // Predicated region
        $region49: #{tpu_custom_call.1} parent=11 // pred_check
          %p382 = pneg %p288
        $region50: #{tpu_custom_call.1} parent=11 // pred_check_branch
          %384 = sbr.rel (%p382) target = $region52
        $region51: #{tpu_custom_call.1} parent=11 // pred_region
          _
        $region52: #{tpu_custom_call.1} parent=11 // pred_fallthru
          _
      $region12: #{tpu_custom_call.1} parent=5 // pred_fallthru
        _
      %p385 = scmp.lt.s32.totalorder %s26, 2
      // Predicated region
      $region53: #{tpu_custom_call.1} parent=5 // pred_check
        %p386 = pneg %p385
      $region54: #{tpu_custom_call.1} parent=5 // pred_check_branch
        %388 = sbr.rel (%p386) target = $region56
      $region55: #{tpu_custom_call.1} parent=5 // pred_region
        // Predicated region
        $region57: #{tpu_custom_call.1} parent=55 // pred_check
          %p389 = pneg %p46
        $region58: #{tpu_custom_call.1} parent=55 // pred_check_branch
          %391 = sbr.rel (%p389) target = $region60
        $region59: #{tpu_custom_call.1} parent=55 // pred_region
          %p392 = scmp.lt.s32.totalorder %s26, 1
          %s393 = scalar_select %p392, %s26, 1
          %s394 = smul.addr %s393, 8
          %s395 = scalar_lea.vmem %s0, %s394
        $region60: #{tpu_custom_call.1} parent=55 // pred_fallthru
          _
        // Predicated region
        $region61: #{tpu_custom_call.1} parent=55 // pred_check
          %p396 = pneg %p72
        $region62: #{tpu_custom_call.1} parent=55 // pred_check_branch
          %398 = sbr.rel (%p396) target = $region64
        $region63: #{tpu_custom_call.1} parent=55 // pred_region
          %p399 = scmp.lt.s32.totalorder %s26, 1
          %s400 = scalar_select %p399, %s26, 1
          %s401 = smul.addr %s400, 8
          %s402 = scalar_lea.vmem %s1, %s401
        $region64: #{tpu_custom_call.1} parent=55 // pred_fallthru
          _
      $region56: #{tpu_custom_call.1} parent=5 // pred_fallthru
        _
      %p403 = scmp.le.s32.totalorder 1, %s26
      %p404 = scmp.lt.s32.totalorder %s26, 3
      %p405 = pnand %p403, %p404
      %p406 = pneg %p405
      // Predicated region
      $region65: #{tpu_custom_call.1} parent=5 // pred_check
        _
      $region66: #{tpu_custom_call.1} parent=5 // pred_check_branch
        %408 = sbr.rel (%p405) target = $region68
      $region67: #{tpu_custom_call.1} parent=5 // pred_region
        %s409 = ssub.s32 %s26, 1
        %p410 = scmp.lt.s32.totalorder %s31, 1
        %s411 = scalar_select %p410, %s31, 1
        %s412 = smul.addr %s411, 8
        %s413 = scalar_lea.vmem %s0, %s412
        %p414 = pneg %p52
        %p415 = pneg %p49
        %p416 = scmp.lt.s32.totalorder %s31, 1
        %s417 = scalar_select %p416, %s31, 1
        %s418 = smul.addr %s417, 8
        %s419 = scalar_lea.vmem %s1, %s418
        %p420 = pneg %p78
        %p421 = pneg %p75
        %p422 = pneg %p99
        %p423 = pneg %p96
        %p424 = pneg %p120
        %p425 = pneg %p117
        %p426 = pneg %p141
        %p427 = pneg %p138
        %p428 = pneg %p162
        %p429 = pneg %p159
        %p430 = pneg %p183
        %p431 = pneg %p180
        %p432 = pneg %p204
        %p433 = pneg %p201
        %p434 = pneg %p225
        %p435 = pneg %p222
        %p436 = pneg %p246
        %p437 = pneg %p243
        %p438 = pneg %p267
        %p439 = pneg %p264
        %p440 = pneg %p288
        %p441 = pneg %p285
        %p442 = pneg %p314
        %p443 = pneg %p311
        %s444 = sand.u32 %s301, 1
        %s445 = scalar_lea.sflag [#allocation3], %s444
        %s446 = sand.u32 %s301, 1
        %s447 = smul.addr %s446, 8
        %s448 = scalar_lea.vmem [#allocation2], %s447
        %p449 = pneg %p340
        %p450 = pneg %p337
        %s451 = sand.u32 %s327, 1
        %s452 = scalar_lea.sflag [#allocation5], %s451
        %s453 = sand.u32 %s327, 1
        %s454 = smul.addr %s453, 32
        %s455 = scalar_lea.vmem [#allocation4], %s454
        %p456 = scmp.lt.s32.totalorder %s31, 1
        %s457 = scalar_select %p456, %s31, 1
        %s458 = smul.addr %s457, 8
        %s459 = scalar_lea.vmem %s0, %s458
        %p460 = scmp.lt.s32.totalorder %s31, 1
        %s461 = scalar_select %p460, %s31, 1
        %s462 = smul.addr %s461, 8
        %s463 = scalar_lea.vmem %s1, %s462
        %v464 = vld [vmem:[%s459] sm:$0xff]
        %vm465 = vcmask 261120
        %v466 = vsel %vm465, %v464, 0.0
        %467 = vadd.xlane.f32.xlu0 %v466
        %v468 = vpop.xlane.xlu0 %467
        %v469 = vrcp.pop 32.0
        %v470 = vmul.f32 %v468, %v469
        %v471 = vsub.f32 %v464, %v470
        %v472 = vmul.f32 %v471, %v471
        %v473 = vsel %vm465, %v472, 0.0
        %474 = vadd.xlane.f32.xlu0 %v473
        %v475 = vpop.xlane.xlu0 %474
        %v476 = vmul.f32 %v475, %v469
        %v477 = vadd.f32 %v476, 1e-05
        %v478 = vrsqrt.pop %v477
        %v479 = vmul.f32 %v471, %v478
        %v480 = vld [vmem:[%s2] sm:$0x1]
        %v481 = vlaneseq
        %v482 = vshrl.u32 %v481, 7
        %v483 = vsub.s32 0, %v482
        %v484 = vrot.slane %v480, %v483
        %v485 = vmul.f32 %v479, %v484
        %v486 = vld [vmem:[%s3] sm:$0x1]
        %v487 = vlaneseq
        %v488 = vshrl.u32 %v487, 7
        %v489 = vsub.s32 0, %v488
        %v490 = vrot.slane %v486, %v489
        %v491 = vadd.f32 %v485, %v490
        %v492 = vld [vmem:[%s4] sm:$0xff]
        %v493 = vld [vmem:[%s4 + $0x8] sm:$0xff]
        %v494 = vld [vmem:[%s4 + $0x10] sm:$0xff]
        %v495 = vld [vmem:[%s4 + $0x18] sm:$0xff]
        %v496 = vld [vmem:[%s4 + $0x20] sm:$0xff]
        %v497 = vld [vmem:[%s4 + $0x28] sm:$0xff]
        %v498 = vld [vmem:[%s4 + $0x30] sm:$0xff]
        %v499 = vld [vmem:[%s4 + $0x38] sm:$0xff]
        %v500 = vld [vmem:[%s4 + $0x40] sm:$0xff]
        %v501 = vld [vmem:[%s4 + $0x48] sm:$0xff]
        %v502 = vld [vmem:[%s4 + $0x50] sm:$0xff]
        %v503 = vld [vmem:[%s4 + $0x58] sm:$0xff]
        %v504 = vld [vmem:[%s4 + $0x60] sm:$0xff]
        %v505 = vld [vmem:[%s4 + $0x68] sm:$0xff]
        %v506 = vld [vmem:[%s4 + $0x70] sm:$0xff]
        %v507 = vld [vmem:[%s4 + $0x78] sm:$0xff]
        %v508 = vld [vmem:[%s5] sm:$0x1]
        %v509 = vld [vmem:[%s5 + $0x1] sm:$0x1]
        %v510 = vld [vmem:[%s5 + $0x2] sm:$0x1]
        %v511 = vld [vmem:[%s5 + $0x3] sm:$0x1]
        %v516 = vlaneseq
        %v517 = vshrl.u32 %v516, 7
        %v518 = vsub.s32 0, %v517
        %v519 = vrot.slane %v508, %v518
        %v520 = vlaneseq
        %v521 = vshrl.u32 %v520, 7
        %v522 = vsub.s32 0, %v521
        %v523 = vrot.slane %v509, %v522
        %v524 = vlaneseq
        %v525 = vshrl.u32 %v524, 7
        %v526 = vsub.s32 0, %v525
        %v527 = vrot.slane %v510, %v526
        %v528 = vlaneseq
        %v529 = vshrl.u32 %v528, 7
        %v530 = vsub.s32 0, %v529
        %v531 = vrot.slane %v511, %v530
        %v537 = vsel %vm465, %v491, 0
        %539 = vmatprep.subr.mxu0 0.0
        %540 = vmatpush1.msra.mxu0 %v492
        %541 = vmatprep.subr.mxu0 0.0
        %542 = vmatpush1.msra.mxu0 %v493
        %543 = vmatprep.subr.mxu0 0.0
        %544 = vmatpush1.msra.mxu0 %v494
        %545 = vmatprep.subr.mxu0 0.0
        %546 = vmatpush1.msra.mxu0 %v495
        %547 = vmatprep.subr.mxu0 0.0
        %548 = vmatpush1.msra.mxu0 0.0
        %549 = vmatprep.subr.mxu0 0.0
        %550 = vmatpush1.msra.mxu0 0.0
        %551 = vmatprep.subr.mxu0 0.0
        %552 = vmatpush1.msra.mxu0 0.0
        %553 = vmatprep.subr.mxu0 0.0
        %554 = vmatpush1.msra.mxu0 0.0
        %555 = vmatprep.subr.mxu0 0.0
        %556 = vmatpush1.msra.mxu0 0.0
        %557 = vmatprep.subr.mxu0 0.0
        %558 = vmatpush1.msra.mxu0 0.0
        %559 = vmatprep.subr.mxu0 0.0
        %560 = vmatpush1.msra.mxu0 0.0
        %561 = vmatprep.subr.mxu0 0.0
        %562 = vmatpush1.msra.mxu0 0.0
        %563 = vmatprep.subr.mxu0 0.0
        %564 = vmatpush1.msra.mxu0 0.0
        %565 = vmatprep.subr.mxu0 0.0
        %566 = vmatpush1.msra.mxu0 0.0
        %567 = vmatprep.subr.mxu0 0.0
        %568 = vmatpush1.msra.mxu0 0.0
        %569 = vmatprep.subr.mxu0 0.0
        %570 = vmatpush1.msra.mxu0 0.0
        %571 = vmatprep.subr.mxu0 0.0
        %572 = vmatpush1.msra.mxu0 0.0
        %573 = vmatprep.subr.mxu0 0.0
        %574 = vmatpush1.msra.mxu0 0.0
        %575 = vmatprep.subr.mxu0 0.0
        %576 = vmatpush1.msra.mxu0 0.0
        %577 = vmatprep.subr.mxu0 0.0
        %578 = vmatpush1.msra.mxu0 0.0
        %579 = vmatprep.subr.mxu0 0.0
        %580 = vmatpush1.msra.mxu0 0.0
        %581 = vmatprep.subr.mxu0 0.0
        %582 = vmatpush1.msra.mxu0 0.0
        %583 = vmatprep.subr.mxu0 0.0
        %584 = vmatpush1.msra.mxu0 0.0
        %585 = vmatprep.subr.mxu0 0.0
        %586 = vmatpush1.msra.mxu0 0.0
        %587 = vmatprep.subr.mxu0 0.0
        %588 = vmatpush1.msra.mxu0 0.0
        %589 = vmatprep.subr.mxu0 0.0
        %590 = vmatpush1.msra.mxu0 0.0
        %591 = vmatprep.subr.mxu0 0.0
        %592 = vmatpush1.msra.mxu0 0.0
        %593 = vmatprep.subr.mxu0 0.0
        %594 = vmatpush1.msra.mxu0 0.0
        %595 = vmatprep.subr.mxu0 0.0
        %596 = vmatpush1.msra.mxu0 0.0
        %597 = vmatprep.subr.mxu0 0.0
        %598 = vmatpush1.msra.mxu0 0.0
        %599 = vmatprep.subr.mxu0 0.0
        %600 = vmatpush1.msra.mxu0 0.0
        %601 = vmatprep.subr.mxu0 0.0
        %602 = vmatpush1.msra.mxu0 0.0
        %603 = vmatprep.mubr.f32.mxu0 0.0
        %604 = vmatmul.mubr.f32.gmra.mrb[0].mxu0 %v537
        %v605 = vpop.f32.mrb[0].mxu0
        %v606 = vadd.f32 %v519, %v605
        %v607 = vpop.f32.mrb[0].mxu0
        %608 = vdwg.mxu0
        %609 = vmatprep.subr.mxu0 0.0
        %610 = vmatpush1.msra.mxu0 %v496
        %611 = vmatprep.subr.mxu0 0.0
        %612 = vmatpush1.msra.mxu0 %v497
        %613 = vmatprep.subr.mxu0 0.0
        %614 = vmatpush1.msra.mxu0 %v498
        %615 = vmatprep.subr.mxu0 0.0
        %616 = vmatpush1.msra.mxu0 %v499
        %617 = vmatprep.subr.mxu0 0.0
        %618 = vmatpush1.msra.mxu0 0.0
        %619 = vmatprep.subr.mxu0 0.0
        %620 = vmatpush1.msra.mxu0 0.0
        %621 = vmatprep.subr.mxu0 0.0
        %622 = vmatpush1.msra.mxu0 0.0
        %623 = vmatprep.subr.mxu0 0.0
        %624 = vmatpush1.msra.mxu0 0.0
        %625 = vmatprep.subr.mxu0 0.0
        %626 = vmatpush1.msra.mxu0 0.0
        %627 = vmatprep.subr.mxu0 0.0
        %628 = vmatpush1.msra.mxu0 0.0
        %629 = vmatprep.subr.mxu0 0.0
        %630 = vmatpush1.msra.mxu0 0.0
        %631 = vmatprep.subr.mxu0 0.0
        %632 = vmatpush1.msra.mxu0 0.0
        %633 = vmatprep.subr.mxu0 0.0
        %634 = vmatpush1.msra.mxu0 0.0
        %635 = vmatprep.subr.mxu0 0.0
        %636 = vmatpush1.msra.mxu0 0.0
        %637 = vmatprep.subr.mxu0 0.0
        %638 = vmatpush1.msra.mxu0 0.0
        %639 = vmatprep.subr.mxu0 0.0
        %640 = vmatpush1.msra.mxu0 0.0
        %641 = vmatprep.subr.mxu0 0.0
        %642 = vmatpush1.msra.mxu0 0.0
        %643 = vmatprep.subr.mxu0 0.0
        %644 = vmatpush1.msra.mxu0 0.0
        %645 = vmatprep.subr.mxu0 0.0
        %646 = vmatpush1.msra.mxu0 0.0
        %647 = vmatprep.subr.mxu0 0.0
        %648 = vmatpush1.msra.mxu0 0.0
        %649 = vmatprep.subr.mxu0 0.0
        %650 = vmatpush1.msra.mxu0 0.0
        %651 = vmatprep.subr.mxu0 0.0
        %652 = vmatpush1.msra.mxu0 0.0
        %653 = vmatprep.subr.mxu0 0.0
        %654 = vmatpush1.msra.mxu0 0.0
        %655 = vmatprep.subr.mxu0 0.0
        %656 = vmatpush1.msra.mxu0 0.0
        %657 = vmatprep.subr.mxu0 0.0
        %658 = vmatpush1.msra.mxu0 0.0
        %659 = vmatprep.subr.mxu0 0.0
        %660 = vmatpush1.msra.mxu0 0.0
        %661 = vmatprep.subr.mxu0 0.0
        %662 = vmatpush1.msra.mxu0 0.0
        %663 = vmatprep.subr.mxu0 0.0
        %664 = vmatpush1.msra.mxu0 0.0
        %665 = vmatprep.subr.mxu0 0.0
        %666 = vmatpush1.msra.mxu0 0.0
        %667 = vmatprep.subr.mxu0 0.0
        %668 = vmatpush1.msra.mxu0 0.0
        %669 = vmatprep.subr.mxu0 0.0
        %670 = vmatpush1.msra.mxu0 0.0
        %671 = vmatprep.subr.mxu0 0.0
        %672 = vmatpush1.msra.mxu0 0.0
        %673 = vmatprep.mubr.f32.mxu0 0.0
        %674 = vmatmul.mubr.f32.gmra.mrb[0].mxu0 %v537
        %v675 = vpop.f32.mrb[0].mxu0
        %v676 = vadd.f32 %v523, %v675
        %v677 = vpop.f32.mrb[0].mxu0
        %678 = vdwg.mxu0
        %679 = vmatprep.subr.mxu0 0.0
        %680 = vmatpush1.msra.mxu0 %v500
        %681 = vmatprep.subr.mxu0 0.0
        %682 = vmatpush1.msra.mxu0 %v501
        %683 = vmatprep.subr.mxu0 0.0
        %684 = vmatpush1.msra.mxu0 %v502
        %685 = vmatprep.subr.mxu0 0.0
        %686 = vmatpush1.msra.mxu0 %v503
        %687 = vmatprep.subr.mxu0 0.0
        %688 = vmatpush1.msra.mxu0 0.0
        %689 = vmatprep.subr.mxu0 0.0
        %690 = vmatpush1.msra.mxu0 0.0
        %691 = vmatprep.subr.mxu0 0.0
        %692 = vmatpush1.msra.mxu0 0.0
        %693 = vmatprep.subr.mxu0 0.0
        %694 = vmatpush1.msra.mxu0 0.0
        %695 = vmatprep.subr.mxu0 0.0
        %696 = vmatpush1.msra.mxu0 0.0
        %697 = vmatprep.subr.mxu0 0.0
        %698 = vmatpush1.msra.mxu0 0.0
        %699 = vmatprep.subr.mxu0 0.0
        %700 = vmatpush1.msra.mxu0 0.0
        %701 = vmatprep.subr.mxu0 0.0
        %702 = vmatpush1.msra.mxu0 0.0
        %703 = vmatprep.subr.mxu0 0.0
        %704 = vmatpush1.msra.mxu0 0.0
        %705 = vmatprep.subr.mxu0 0.0
        %706 = vmatpush1.msra.mxu0 0.0
        %707 = vmatprep.subr.mxu0 0.0
        %708 = vmatpush1.msra.mxu0 0.0
        %709 = vmatprep.subr.mxu0 0.0
        %710 = vmatpush1.msra.mxu0 0.0
        %711 = vmatprep.subr.mxu0 0.0
        %712 = vmatpush1.msra.mxu0 0.0
        %713 = vmatprep.subr.mxu0 0.0
        %714 = vmatpush1.msra.mxu0 0.0
        %715 = vmatprep.subr.mxu0 0.0
        %716 = vmatpush1.msra.mxu0 0.0
        %717 = vmatprep.subr.mxu0 0.0
        %718 = vmatpush1.msra.mxu0 0.0
        %719 = vmatprep.subr.mxu0 0.0
        %720 = vmatpush1.msra.mxu0 0.0
        %721 = vmatprep.subr.mxu0 0.0
        %722 = vmatpush1.msra.mxu0 0.0
        %723 = vmatprep.subr.mxu0 0.0
        %724 = vmatpush1.msra.mxu0 0.0
        %725 = vmatprep.subr.mxu0 0.0
        %726 = vmatpush1.msra.mxu0 0.0
        %727 = vmatprep.subr.mxu0 0.0
        %728 = vmatpush1.msra.mxu0 0.0
        %729 = vmatprep.subr.mxu0 0.0
        %730 = vmatpush1.msra.mxu0 0.0
        %731 = vmatprep.subr.mxu0 0.0
        %732 = vmatpush1.msra.mxu0 0.0
        %733 = vmatprep.subr.mxu0 0.0
        %734 = vmatpush1.msra.mxu0 0.0
        %735 = vmatprep.subr.mxu0 0.0
        %736 = vmatpush1.msra.mxu0 0.0
        %737 = vmatprep.subr.mxu0 0.0
        %738 = vmatpush1.msra.mxu0 0.0
        %739 = vmatprep.subr.mxu0 0.0
        %740 = vmatpush1.msra.mxu0 0.0
        %741 = vmatprep.subr.mxu0 0.0
        %742 = vmatpush1.msra.mxu0 0.0
        %743 = vmatprep.mubr.f32.mxu0 0.0
        %744 = vmatmul.mubr.f32.gmra.mrb[0].mxu0 %v537
        %v745 = vpop.f32.mrb[0].mxu0
        %v746 = vadd.f32 %v527, %v745
        %v747 = vpop.f32.mrb[0].mxu0
        %748 = vdwg.mxu0
        %749 = vmatprep.subr.mxu0 0.0
        %750 = vmatpush1.msra.mxu0 %v504
        %751 = vmatprep.subr.mxu0 0.0
        %752 = vmatpush1.msra.mxu0 %v505
        %753 = vmatprep.subr.mxu0 0.0
        %754 = vmatpush1.msra.mxu0 %v506
        %755 = vmatprep.subr.mxu0 0.0
        %756 = vmatpush1.msra.mxu0 %v507
        %757 = vmatprep.subr.mxu0 0.0
        %758 = vmatpush1.msra.mxu0 0.0
        %759 = vmatprep.subr.mxu0 0.0
        %760 = vmatpush1.msra.mxu0 0.0
        %761 = vmatprep.subr.mxu0 0.0
        %762 = vmatpush1.msra.mxu0 0.0
        %763 = vmatprep.subr.mxu0 0.0
        %764 = vmatpush1.msra.mxu0 0.0
        %765 = vmatprep.subr.mxu0 0.0
        %766 = vmatpush1.msra.mxu0 0.0
        %767 = vmatprep.subr.mxu0 0.0
        %768 = vmatpush1.msra.mxu0 0.0
        %769 = vmatprep.subr.mxu0 0.0
        %770 = vmatpush1.msra.mxu0 0.0
        %771 = vmatprep.subr.mxu0 0.0
        %772 = vmatpush1.msra.mxu0 0.0
        %773 = vmatprep.subr.mxu0 0.0
        %774 = vmatpush1.msra.mxu0 0.0
        %775 = vmatprep.subr.mxu0 0.0
        %776 = vmatpush1.msra.mxu0 0.0
        %777 = vmatprep.subr.mxu0 0.0
        %778 = vmatpush1.msra.mxu0 0.0
        %779 = vmatprep.subr.mxu0 0.0
        %780 = vmatpush1.msra.mxu0 0.0
        %781 = vmatprep.subr.mxu0 0.0
        %782 = vmatpush1.msra.mxu0 0.0
        %783 = vmatprep.subr.mxu0 0.0
        %784 = vmatpush1.msra.mxu0 0.0
        %785 = vmatprep.subr.mxu0 0.0
        %786 = vmatpush1.msra.mxu0 0.0
        %787 = vmatprep.subr.mxu0 0.0
        %788 = vmatpush1.msra.mxu0 0.0
        %789 = vmatprep.subr.mxu0 0.0
        %790 = vmatpush1.msra.mxu0 0.0
        %791 = vmatprep.subr.mxu0 0.0
        %792 = vmatpush1.msra.mxu0 0.0
        %793 = vmatprep.subr.mxu0 0.0
        %794 = vmatpush1.msra.mxu0 0.0
        %795 = vmatprep.subr.mxu0 0.0
        %796 = vmatpush1.msra.mxu0 0.0
        %797 = vmatprep.subr.mxu0 0.0
        %798 = vmatpush1.msra.mxu0 0.0
        %799 = vmatprep.subr.mxu0 0.0
        %800 = vmatpush1.msra.mxu0 0.0
        %801 = vmatprep.subr.mxu0 0.0
        %802 = vmatpush1.msra.mxu0 0.0
        %803 = vmatprep.subr.mxu0 0.0
        %804 = vmatpush1.msra.mxu0 0.0
        %805 = vmatprep.subr.mxu0 0.0
        %806 = vmatpush1.msra.mxu0 0.0
        %807 = vmatprep.subr.mxu0 0.0
        %808 = vmatpush1.msra.mxu0 0.0
        %809 = vmatprep.subr.mxu0 0.0
        %810 = vmatpush1.msra.mxu0 0.0
        %811 = vmatprep.subr.mxu0 0.0
        %812 = vmatpush1.msra.mxu0 0.0
        %813 = vmatprep.mubr.f32.mxu0 0.0
        %814 = vmatmul.mubr.f32.gmra.mrb[0].mxu0 %v537
        %v815 = vpop.f32.mrb[0].mxu0
        %v816 = vadd.f32 %v531, %v815
        %v817 = vpop.f32.mrb[0].mxu0
        %818 = vdwg.mxu0
        %v819 = vmul.f32 %v606, 0.35355338
        %v820 = vmul.f32 %v676, 0.35355338
        %v821 = vmul.f32 %v746, 0.35355338
        %v822 = vmul.f32 %v816, 0.35355338
        %s823 = scalar_lea.vmem %s4, 128
        %v824 = vld [vmem:[%s823] sm:$0xff]
        %v825 = vld [vmem:[%s823 + $0x8] sm:$0xff]
        %v826 = vld [vmem:[%s823 + $0x10] sm:$0xff]
        %v827 = vld [vmem:[%s823 + $0x18] sm:$0xff]
        %v828 = vld [vmem:[%s823 + $0x20] sm:$0xff]
        %v829 = vld [vmem:[%s823 + $0x28] sm:$0xff]
        %v830 = vld [vmem:[%s823 + $0x30] sm:$0xff]
        %v831 = vld [vmem:[%s823 + $0x38] sm:$0xff]
        %v832 = vld [vmem:[%s823 + $0x40] sm:$0xff]
        %v833 = vld [vmem:[%s823 + $0x48] sm:$0xff]
        %v834 = vld [vmem:[%s823 + $0x50] sm:$0xff]
        %v835 = vld [vmem:[%s823 + $0x58] sm:$0xff]
        %v836 = vld [vmem:[%s823 + $0x60] sm:$0xff]
        %v837 = vld [vmem:[%s823 + $0x68] sm:$0xff]
        %v838 = vld [vmem:[%s823 + $0x70] sm:$0xff]
        %v839 = vld [vmem:[%s823 + $0x78] sm:$0xff]
        %s840 = scalar_lea.vmem %s5, 4
        %v841 = vld [vmem:[%s840] sm:$0x1]
        %v842 = vld [vmem:[%s840 + $0x1] sm:$0x1]
        %v843 = vld [vmem:[%s840 + $0x2] sm:$0x1]
        %v844 = vld [vmem:[%s840 + $0x3] sm:$0x1]
        %v849 = vlaneseq
        %v850 = vshrl.u32 %v849, 7
        %v851 = vsub.s32 0, %v850
        %v852 = vrot.slane %v841, %v851
        %v853 = vlaneseq
        %v854 = vshrl.u32 %v853, 7
        %v855 = vsub.s32 0, %v854
        %v856 = vrot.slane %v842, %v855
        %v857 = vlaneseq
        %v858 = vshrl.u32 %v857, 7
        %v859 = vsub.s32 0, %v858
        %v860 = vrot.slane %v843, %v859
        %v861 = vlaneseq
        %v862 = vshrl.u32 %v861, 7
        %v863 = vsub.s32 0, %v862
        %v864 = vrot.slane %v844, %v863
        %869 = vmatprep.subr.mxu0 0.0
        %870 = vmatpush1.msra.mxu0 %v824
        %871 = vmatprep.subr.mxu0 0.0
        %872 = vmatpush1.msra.mxu0 %v825
        %873 = vmatprep.subr.mxu0 0.0
        %874 = vmatpush1.msra.mxu0 %v826
        %875 = vmatprep.subr.mxu0 0.0
        %876 = vmatpush1.msra.mxu0 %v827
        %877 = vmatprep.subr.mxu0 0.0
        %878 = vmatpush1.msra.mxu0 0.0
        %879 = vmatprep.subr.mxu0 0.0
        %880 = vmatpush1.msra.mxu0 0.0
        %881 = vmatprep.subr.mxu0 0.0
        %882 = vmatpush1.msra.mxu0 0.0
        %883 = vmatprep.subr.mxu0 0.0
        %884 = vmatpush1.msra.mxu0 0.0
        %885 = vmatprep.subr.mxu0 0.0
        %886 = vmatpush1.msra.mxu0 0.0
        %887 = vmatprep.subr.mxu0 0.0
        %888 = vmatpush1.msra.mxu0 0.0
        %889 = vmatprep.subr.mxu0 0.0
        %890 = vmatpush1.msra.mxu0 0.0
        %891 = vmatprep.subr.mxu0 0.0
        %892 = vmatpush1.msra.mxu0 0.0
        %893 = vmatprep.subr.mxu0 0.0
        %894 = vmatpush1.msra.mxu0 0.0
        %895 = vmatprep.subr.mxu0 0.0
        %896 = vmatpush1.msra.mxu0 0.0
        %897 = vmatprep.subr.mxu0 0.0
        %898 = vmatpush1.msra.mxu0 0.0
        %899 = vmatprep.subr.mxu0 0.0
        %900 = vmatpush1.msra.mxu0 0.0
        %901 = vmatprep.subr.mxu0 0.0
        %902 = vmatpush1.msra.mxu0 0.0
        %903 = vmatprep.subr.mxu0 0.0
        %904 = vmatpush1.msra.mxu0 0.0
        %905 = vmatprep.subr.mxu0 0.0
        %906 = vmatpush1.msra.mxu0 0.0
        %907 = vmatprep.subr.mxu0 0.0
        %908 = vmatpush1.msra.mxu0 0.0
        %909 = vmatprep.subr.mxu0 0.0
        %910 = vmatpush1.msra.mxu0 0.0
        %911 = vmatprep.subr.mxu0 0.0
        %912 = vmatpush1.msra.mxu0 0.0
        %913 = vmatprep.subr.mxu0 0.0
        %914 = vmatpush1.msra.mxu0 0.0
        %915 = vmatprep.subr.mxu0 0.0
        %916 = vmatpush1.msra.mxu0 0.0
        %917 = vmatprep.subr.mxu0 0.0
        %918 = vmatpush1.msra.mxu0 0.0
        %919 = vmatprep.subr.mxu0 0.0
        %920 = vmatpush1.msra.mxu0 0.0
        %921 = vmatprep.subr.mxu0 0.0
        %922 = vmatpush1.msra.mxu0 0.0
        %923 = vmatprep.subr.mxu0 0.0
        %924 = vmatpush1.msra.mxu0 0.0
        %925 = vmatprep.subr.mxu0 0.0
        %926 = vmatpush1.msra.mxu0 0.0
        %927 = vmatprep.subr.mxu0 0.0
        %928 = vmatpush1.msra.mxu0 0.0
        %929 = vmatprep.subr.mxu0 0.0
        %930 = vmatpush1.msra.mxu0 0.0
        %931 = vmatprep.subr.mxu0 0.0
        %932 = vmatpush1.msra.mxu0 0.0
        %933 = vmatprep.mubr.f32.mxu0 0.0
        %934 = vmatmul.mubr.f32.gmra.mrb[0].mxu0 %v537
        %v935 = vpop.f32.mrb[0].mxu0
        %v936 = vadd.f32 %v852, %v935
        %v937 = vpop.f32.mrb[0].mxu0
        %938 = vdwg.mxu0
        %939 = vmatprep.subr.mxu0 0.0
        %940 = vmatpush1.msra.mxu0 %v828
        %941 = vmatprep.subr.mxu0 0.0
        %942 = vmatpush1.msra.mxu0 %v829
        %943 = vmatprep.subr.mxu0 0.0
        %944 = vmatpush1.msra.mxu0 %v830
        %945 = vmatprep.subr.mxu0 0.0
        %946 = vmatpush1.msra.mxu0 %v831
        %947 = vmatprep.subr.mxu0 0.0
        %948 = vmatpush1.msra.mxu0 0.0
        %949 = vmatprep.subr.mxu0 0.0
        %950 = vmatpush1.msra.mxu0 0.0
        %951 = vmatprep.subr.mxu0 0.0
        %952 = vmatpush1.msra.mxu0 0.0
        %953 = vmatprep.subr.mxu0 0.0
        %954 = vmatpush1.msra.mxu0 0.0
        %955 = vmatprep.subr.mxu0 0.0
        %956 = vmatpush1.msra.mxu0 0.0
        %957 = vmatprep.subr.mxu0 0.0
        %958 = vmatpush1.msra.mxu0 0.0
        %959 = vmatprep.subr.mxu0 0.0
        %960 = vmatpush1.msra.mxu0 0.0
        %961 = vmatprep.subr.mxu0 0.0
        %962 = vmatpush1.msra.mxu0 0.0
        %963 = vmatprep.subr.mxu0 0.0
        %964 = vmatpush1.msra.mxu0 0.0
        %965 = vmatprep.subr.mxu0 0.0
        %966 = vmatpush1.msra.mxu0 0.0
        %967 = vmatprep.subr.mxu0 0.0
        %968 = vmatpush1.msra.mxu0 0.0
        %969 = vmatprep.subr.mxu0 0.0
        %970 = vmatpush1.msra.mxu0 0.0
        %971 = vmatprep.subr.mxu0 0.0
        %972 = vmatpush1.msra.mxu0 0.0
        %973 = vmatprep.subr.mxu0 0.0
        %974 = vmatpush1.msra.mxu0 0.0
        %975 = vmatprep.subr.mxu0 0.0
        %976 = vmatpush1.msra.mxu0 0.0
        %977 = vmatprep.subr.mxu0 0.0
        %978 = vmatpush1.msra.mxu0 0.0
        %979 = vmatprep.subr.mxu0 0.0
        %980 = vmatpush1.msra.mxu0 0.0
        %981 = vmatprep.subr.mxu0 0.0
        %982 = vmatpush1.msra.mxu0 0.0
        %983 = vmatprep.subr.mxu0 0.0
        %984 = vmatpush1.msra.mxu0 0.0
        %985 = vmatprep.subr.mxu0 0.0
        %986 = vmatpush1.msra.mxu0 0.0
        %987 = vmatprep.subr.mxu0 0.0
        %988 = vmatpush1.msra.mxu0 0.0
        %989 = vmatprep.subr.mxu0 0.0
        %990 = vmatpush1.msra.mxu0 0.0
        %991 = vmatprep.subr.mxu0 0.0
        %992 = vmatpush1.msra.mxu0 0.0
        %993 = vmatprep.subr.mxu0 0.0
        %994 = vmatpush1.msra.mxu0 0.0
        %995 = vmatprep.subr.mxu0 0.0
        %996 = vmatpush1.msra.mxu0 0.0
        %997 = vmatprep.subr.mxu0 0.0
        %998 = vmatpush1.msra.mxu0 0.0
        %999 = vmatprep.subr.mxu0 0.0
        %1000 = vmatpush1.msra.mxu0 0.0
        %1001 = vmatprep.subr.mxu0 0.0
        %1002 = vmatpush1.msra.mxu0 0.0
        %1003 = vmatprep.mubr.f32.mxu0 0.0
        %1004 = vmatmul.mubr.f32.gmra.mrb[0].mxu0 %v537
        %v1005 = vpop.f32.mrb[0].mxu0
        %v1006 = vadd.f32 %v856, %v1005
        %v1007 = vpop.f32.mrb[0].mxu0
        %1008 = vdwg.mxu0
        %1009 = vmatprep.subr.mxu0 0.0
        %1010 = vmatpush1.msra.mxu0 %v832
        %1011 = vmatprep.subr.mxu0 0.0
        %1012 = vmatpush1.msra.mxu0 %v833
        %1013 = vmatprep.subr.mxu0 0.0
        %1014 = vmatpush1.msra.mxu0 %v834
        %1015 = vmatprep.subr.mxu0 0.0
        %1016 = vmatpush1.msra.mxu0 %v835
        %1017 = vmatprep.subr.mxu0 0.0
        %1018 = vmatpush1.msra.mxu0 0.0
        %1019 = vmatprep.subr.mxu0 0.0
        %1020 = vmatpush1.msra.mxu0 0.0
        %1021 = vmatprep.subr.mxu0 0.0
        %1022 = vmatpush1.msra.mxu0 0.0
        %1023 = vmatprep.subr.mxu0 0.0
        %1024 = vmatpush1.msra.mxu0 0.0
        %1025 = vmatprep.subr.mxu0 0.0
        %1026 = vmatpush1.msra.mxu0 0.0
        %1027 = vmatprep.subr.mxu0 0.0
        %1028 = vmatpush1.msra.mxu0 0.0
        %1029 = vmatprep.subr.mxu0 0.0
        %1030 = vmatpush1.msra.mxu0 0.0
        %1031 = vmatprep.subr.mxu0 0.0
        %1032 = vmatpush1.msra.mxu0 0.0
        %1033 = vmatprep.subr.mxu0 0.0
        %1034 = vmatpush1.msra.mxu0 0.0
        %1035 = vmatprep.subr.mxu0 0.0
        %1036 = vmatpush1.msra.mxu0 0.0
        %1037 = vmatprep.subr.mxu0 0.0
        %1038 = vmatpush1.msra.mxu0 0.0
        %1039 = vmatprep.subr.mxu0 0.0
        %1040 = vmatpush1.msra.mxu0 0.0
        %1041 = vmatprep.subr.mxu0 0.0
        %1042 = vmatpush1.msra.mxu0 0.0
        %1043 = vmatprep.subr.mxu0 0.0
        %1044 = vmatpush1.msra.mxu0 0.0
        %1045 = vmatprep.subr.mxu0 0.0
        %1046 = vmatpush1.msra.mxu0 0.0
        %1047 = vmatprep.subr.mxu0 0.0
        %1048 = vmatpush1.msra.mxu0 0.0
        %1049 = vmatprep.subr.mxu0 0.0
        %1050 = vmatpush1.msra.mxu0 0.0
        %1051 = vmatprep.subr.mxu0 0.0
        %1052 = vmatpush1.msra.mxu0 0.0
        %1053 = vmatprep.subr.mxu0 0.0
        %1054 = vmatpush1.msra.mxu0 0.0
        %1055 = vmatprep.subr.mxu0 0.0
        %1056 = vmatpush1.msra.mxu0 0.0
        %1057 = vmatprep.subr.mxu0 0.0
        %1058 = vmatpush1.msra.mxu0 0.0
        %1059 = vmatprep.subr.mxu0 0.0
        %1060 = vmatpush1.msra.mxu0 0.0
        %1061 = vmatprep.subr.mxu0 0.0
        %1062 = vmatpush1.msra.mxu0 0.0
        %1063 = vmatprep.subr.mxu0 0.0
        %1064 = vmatpush1.msra.mxu0 0.0
        %1065 = vmatprep.subr.mxu0 0.0
        %1066 = vmatpush1.msra.mxu0 0.0
        %1067 = vmatprep.subr.mxu0 0.0
        %1068 = vmatpush1.msra.mxu0 0.0
        %1069 = vmatprep.subr.mxu0 0.0
        %1070 = vmatpush1.msra.mxu0 0.0
        %1071 = vmatprep.subr.mxu0 0.0
        %1072 = vmatpush1.msra.mxu0 0.0
        %1073 = vmatprep.mubr.f32.mxu0 0.0
        %1074 = vmatmul.mubr.f32.gmra.mrb[0].mxu0 %v537
        %v1075 = vpop.f32.mrb[0].mxu0
        %v1076 = vadd.f32 %v860, %v1075
        %v1077 = vpop.f32.mrb[0].mxu0
        %1078 = vdwg.mxu0
        %1079 = vmatprep.subr.mxu0 0.0
        %1080 = vmatpush1.msra.mxu0 %v836
        %1081 = vmatprep.subr.mxu0 0.0
        %1082 = vmatpush1.msra.mxu0 %v837
        %1083 = vmatprep.subr.mxu0 0.0
        %1084 = vmatpush1.msra.mxu0 %v838
        %1085 = vmatprep.subr.mxu0 0.0
        %1086 = vmatpush1.msra.mxu0 %v839
        %1087 = vmatprep.subr.mxu0 0.0
        %1088 = vmatpush1.msra.mxu0 0.0
        %1089 = vmatprep.subr.mxu0 0.0
        %1090 = vmatpush1.msra.mxu0 0.0
        %1091 = vmatprep.subr.mxu0 0.0
        %1092 = vmatpush1.msra.mxu0 0.0
        %1093 = vmatprep.subr.mxu0 0.0
        %1094 = vmatpush1.msra.mxu0 0.0
        %1095 = vmatprep.subr.mxu0 0.0
        %1096 = vmatpush1.msra.mxu0 0.0
        %1097 = vmatprep.subr.mxu0 0.0
        %1098 = vmatpush1.msra.mxu0 0.0
        %1099 = vmatprep.subr.mxu0 0.0
        %1100 = vmatpush1.msra.mxu0 0.0
        %1101 = vmatprep.subr.mxu0 0.0
        %1102 = vmatpush1.msra.mxu0 0.0
        %1103 = vmatprep.subr.mxu0 0.0
        %1104 = vmatpush1.msra.mxu0 0.0
        %1105 = vmatprep.subr.mxu0 0.0
        %1106 = vmatpush1.msra.mxu0 0.0
        %1107 = vmatprep.subr.mxu0 0.0
        %1108 = vmatpush1.msra.mxu0 0.0
        %1109 = vmatprep.subr.mxu0 0.0
        %1110 = vmatpush1.msra.mxu0 0.0
        %1111 = vmatprep.subr.mxu0 0.0
        %1112 = vmatpush1.msra.mxu0 0.0
        %1113 = vmatprep.subr.mxu0 0.0
        %1114 = vmatpush1.msra.mxu0 0.0
        %1115 = vmatprep.subr.mxu0 0.0
        %1116 = vmatpush1.msra.mxu0 0.0
        %1117 = vmatprep.subr.mxu0 0.0
        %1118 = vmatpush1.msra.mxu0 0.0
        %1119 = vmatprep.subr.mxu0 0.0
        %1120 = vmatpush1.msra.mxu0 0.0
        %1121 = vmatprep.subr.mxu0 0.0
        %1122 = vmatpush1.msra.mxu0 0.0
        %1123 = vmatprep.subr.mxu0 0.0
        %1124 = vmatpush1.msra.mxu0 0.0
        %1125 = vmatprep.subr.mxu0 0.0
        %1126 = vmatpush1.msra.mxu0 0.0
        %1127 = vmatprep.subr.mxu0 0.0
        %1128 = vmatpush1.msra.mxu0 0.0
        %1129 = vmatprep.subr.mxu0 0.0
        %1130 = vmatpush1.msra.mxu0 0.0
        %1131 = vmatprep.subr.mxu0 0.0
        %1132 = vmatpush1.msra.mxu0 0.0
        %1133 = vmatprep.subr.mxu0 0.0
        %1134 = vmatpush1.msra.mxu0 0.0
        %1135 = vmatprep.subr.mxu0 0.0
        %1136 = vmatpush1.msra.mxu0 0.0
        %1137 = vmatprep.subr.mxu0 0.0
        %1138 = vmatpush1.msra.mxu0 0.0
        %1139 = vmatprep.subr.mxu0 0.0
        %1140 = vmatpush1.msra.mxu0 0.0
        %1141 = vmatprep.subr.mxu0 0.0
        %1142 = vmatpush1.msra.mxu0 0.0
        %1143 = vmatprep.mubr.f32.mxu0 0.0
        %1144 = vmatmul.mubr.f32.gmra.mrb[0].mxu0 %v537
        %v1145 = vpop.f32.mrb[0].mxu0
        %v1146 = vadd.f32 %v864, %v1145
        %v1147 = vpop.f32.mrb[0].mxu0
        %1148 = vdwg.mxu0
        %s1149 = scalar_lea.vmem %s4, 256
        %v1150 = vld [vmem:[%s1149] sm:$0xff]
        %v1151 = vld [vmem:[%s1149 + $0x8] sm:$0xff]
        %v1152 = vld [vmem:[%s1149 + $0x10] sm:$0xff]
        %v1153 = vld [vmem:[%s1149 + $0x18] sm:$0xff]
        %v1154 = vld [vmem:[%s1149 + $0x20] sm:$0xff]
        %v1155 = vld [vmem:[%s1149 + $0x28] sm:$0xff]
        %v1156 = vld [vmem:[%s1149 + $0x30] sm:$0xff]
        %v1157 = vld [vmem:[%s1149 + $0x38] sm:$0xff]
        %v1158 = vld [vmem:[%s1149 + $0x40] sm:$0xff]
        %v1159 = vld [vmem:[%s1149 + $0x48] sm:$0xff]
        %v1160 = vld [vmem:[%s1149 + $0x50] sm:$0xff]
        %v1161 = vld [vmem:[%s1149 + $0x58] sm:$0xff]
        %v1162 = vld [vmem:[%s1149 + $0x60] sm:$0xff]
        %v1163 = vld [vmem:[%s1149 + $0x68] sm:$0xff]
        %v1164 = vld [vmem:[%s1149 + $0x70] sm:$0xff]
        %v1165 = vld [vmem:[%s1149 + $0x78] sm:$0xff]
        %s1166 = scalar_lea.vmem %s5, 8
        %v1167 = vld [vmem:[%s1166] sm:$0x1]
        %v1168 = vld [vmem:[%s1166 + $0x1] sm:$0x1]
        %v1169 = vld [vmem:[%s1166 + $0x2] sm:$0x1]
        %v1170 = vld [vmem:[%s1166 + $0x3] sm:$0x1]
        %v1175 = vlaneseq
        %v1176 = vshrl.u32 %v1175, 7
        %v1177 = vsub.s32 0, %v1176
        %v1178 = vrot.slane %v1167, %v1177
        %v1179 = vlaneseq
        %v1180 = vshrl.u32 %v1179, 7
        %v1181 = vsub.s32 0, %v1180
        %v1182 = vrot.slane %v1168, %v1181
        %v1183 = vlaneseq
        %v1184 = vshrl.u32 %v1183, 7
        %v1185 = vsub.s32 0, %v1184
        %v1186 = vrot.slane %v1169, %v1185
        %v1187 = vlaneseq
        %v1188 = vshrl.u32 %v1187, 7
        %v1189 = vsub.s32 0, %v1188
        %v1190 = vrot.slane %v1170, %v1189
        %1195 = vmatprep.subr.mxu0 0.0
        %1196 = vmatpush1.msra.mxu0 %v1150
        %1197 = vmatprep.subr.mxu0 0.0
        %1198 = vmatpush1.msra.mxu0 %v1151
        %1199 = vmatprep.subr.mxu0 0.0
        %1200 = vmatpush1.msra.mxu0 %v1152
        %1201 = vmatprep.subr.mxu0 0.0
        %1202 = vmatpush1.msra.mxu0 %v1153
        %1203 = vmatprep.subr.mxu0 0.0
        %1204 = vmatpush1.msra.mxu0 0.0
        %1205 = vmatprep.subr.mxu0 0.0
        %1206 = vmatpush1.msra.mxu0 0.0
        %1207 = vmatprep.subr.mxu0 0.0
        %1208 = vmatpush1.msra.mxu0 0.0
        %1209 = vmatprep.subr.mxu0 0.0
        %1210 = vmatpush1.msra.mxu0 0.0
        %1211 = vmatprep.subr.mxu0 0.0
        %1212 = vmatpush1.msra.mxu0 0.0
        %1213 = vmatprep.subr.mxu0 0.0
        %1214 = vmatpush1.msra.mxu0 0.0
        %1215 = vmatprep.subr.mxu0 0.0
        %1216 = vmatpush1.msra.mxu0 0.0
        %1217 = vmatprep.subr.mxu0 0.0
        %1218 = vmatpush1.msra.mxu0 0.0
        %1219 = vmatprep.subr.mxu0 0.0
        %1220 = vmatpush1.msra.mxu0 0.0
        %1221 = vmatprep.subr.mxu0 0.0
        %1222 = vmatpush1.msra.mxu0 0.0
        %1223 = vmatprep.subr.mxu0 0.0
        %1224 = vmatpush1.msra.mxu0 0.0
        %1225 = vmatprep.subr.mxu0 0.0
        %1226 = vmatpush1.msra.mxu0 0.0
        %1227 = vmatprep.subr.mxu0 0.0
        %1228 = vmatpush1.msra.mxu0 0.0
        %1229 = vmatprep.subr.mxu0 0.0
        %1230 = vmatpush1.msra.mxu0 0.0
        %1231 = vmatprep.subr.mxu0 0.0
        %1232 = vmatpush1.msra.mxu0 0.0
        %1233 = vmatprep.subr.mxu0 0.0
        %1234 = vmatpush1.msra.mxu0 0.0
        %1235 = vmatprep.subr.mxu0 0.0
        %1236 = vmatpush1.msra.mxu0 0.0
        %1237 = vmatprep.subr.mxu0 0.0
        %1238 = vmatpush1.msra.mxu0 0.0
        %1239 = vmatprep.subr.mxu0 0.0
        %1240 = vmatpush1.msra.mxu0 0.0
        %1241 = vmatprep.subr.mxu0 0.0
        %1242 = vmatpush1.msra.mxu0 0.0
        %1243 = vmatprep.subr.mxu0 0.0
        %1244 = vmatpush1.msra.mxu0 0.0
        %1245 = vmatprep.subr.mxu0 0.0
        %1246 = vmatpush1.msra.mxu0 0.0
        %1247 = vmatprep.subr.mxu0 0.0
        %1248 = vmatpush1.msra.mxu0 0.0
        %1249 = vmatprep.subr.mxu0 0.0
        %1250 = vmatpush1.msra.mxu0 0.0
        %1251 = vmatprep.subr.mxu0 0.0
        %1252 = vmatpush1.msra.mxu0 0.0
        %1253 = vmatprep.subr.mxu0 0.0
        %1254 = vmatpush1.msra.mxu0 0.0
        %1255 = vmatprep.subr.mxu0 0.0
        %1256 = vmatpush1.msra.mxu0 0.0
        %1257 = vmatprep.subr.mxu0 0.0
        %1258 = vmatpush1.msra.mxu0 0.0
        %1259 = vmatprep.mubr.f32.mxu0 0.0
        %1260 = vmatmul.mubr.f32.gmra.mrb[0].mxu0 %v537
        %v1261 = vpop.f32.mrb[0].mxu0
        %v1262 = vadd.f32 %v1178, %v1261
        %v1263 = vpop.f32.mrb[0].mxu0
        %1264 = vdwg.mxu0
        %1265 = vmatprep.subr.mxu0 0.0
        %1266 = vmatpush1.msra.mxu0 %v1154
        %1267 = vmatprep.subr.mxu0 0.0
        %1268 = vmatpush1.msra.mxu0 %v1155
        %1269 = vmatprep.subr.mxu0 0.0
        %1270 = vmatpush1.msra.mxu0 %v1156
        %1271 = vmatprep.subr.mxu0 0.0
        %1272 = vmatpush1.msra.mxu0 %v1157
        %1273 = vmatprep.subr.mxu0 0.0
        %1274 = vmatpush1.msra.mxu0 0.0
        %1275 = vmatprep.subr.mxu0 0.0
        %1276 = vmatpush1.msra.mxu0 0.0
        %1277 = vmatprep.subr.mxu0 0.0
        %1278 = vmatpush1.msra.mxu0 0.0
        %1279 = vmatprep.subr.mxu0 0.0
        %1280 = vmatpush1.msra.mxu0 0.0
        %1281 = vmatprep.subr.mxu0 0.0
        %1282 = vmatpush1.msra.mxu0 0.0
        %1283 = vmatprep.subr.mxu0 0.0
        %1284 = vmatpush1.msra.mxu0 0.0
        %1285 = vmatprep.subr.mxu0 0.0
        %1286 = vmatpush1.msra.mxu0 0.0
        %1287 = vmatprep.subr.mxu0 0.0
        %1288 = vmatpush1.msra.mxu0 0.0
        %1289 = vmatprep.subr.mxu0 0.0
        %1290 = vmatpush1.msra.mxu0 0.0
        %1291 = vmatprep.subr.mxu0 0.0
        %1292 = vmatpush1.msra.mxu0 0.0
        %1293 = vmatprep.subr.mxu0 0.0
        %1294 = vmatpush1.msra.mxu0 0.0
        %1295 = vmatprep.subr.mxu0 0.0
        %1296 = vmatpush1.msra.mxu0 0.0
        %1297 = vmatprep.subr.mxu0 0.0
        %1298 = vmatpush1.msra.mxu0 0.0
        %1299 = vmatprep.subr.mxu0 0.0
        %1300 = vmatpush1.msra.mxu0 0.0
        %1301 = vmatprep.subr.mxu0 0.0
        %1302 = vmatpush1.msra.mxu0 0.0
        %1303 = vmatprep.subr.mxu0 0.0
        %1304 = vmatpush1.msra.mxu0 0.0
        %1305 = vmatprep.subr.mxu0 0.0
        %1306 = vmatpush1.msra.mxu0 0.0
        %1307 = vmatprep.subr.mxu0 0.0
        %1308 = vmatpush1.msra.mxu0 0.0
        %1309 = vmatprep.subr.mxu0 0.0
        %1310 = vmatpush1.msra.mxu0 0.0
        %1311 = vmatprep.subr.mxu0 0.0
        %1312 = vmatpush1.msra.mxu0 0.0
        %1313 = vmatprep.subr.mxu0 0.0
        %1314 = vmatpush1.msra.mxu0 0.0
        %1315 = vmatprep.subr.mxu0 0.0
        %1316 = vmatpush1.msra.mxu0 0.0
        %1317 = vmatprep.subr.mxu0 0.0
        %1318 = vmatpush1.msra.mxu0 0.0
        %1319 = vmatprep.subr.mxu0 0.0
        %1320 = vmatpush1.msra.mxu0 0.0
        %1321 = vmatprep.subr.mxu0 0.0
        %1322 = vmatpush1.msra.mxu0 0.0
        %1323 = vmatprep.subr.mxu0 0.0
        %1324 = vmatpush1.msra.mxu0 0.0
        %1325 = vmatprep.subr.mxu0 0.0
        %1326 = vmatpush1.msra.mxu0 0.0
        %1327 = vmatprep.subr.mxu0 0.0
        %1328 = vmatpush1.msra.mxu0 0.0
        %1329 = vmatprep.mubr.f32.mxu0 0.0
        %1330 = vmatmul.mubr.f32.gmra.mrb[0].mxu0 %v537
        %v1331 = vpop.f32.mrb[0].mxu0
        %v1332 = vadd.f32 %v1182, %v1331
        %v1333 = vpop.f32.mrb[0].mxu0
        %1334 = vdwg.mxu0
        %1335 = vmatprep.subr.mxu0 0.0
        %1336 = vmatpush1.msra.mxu0 %v1158
        %1337 = vmatprep.subr.mxu0 0.0
        %1338 = vmatpush1.msra.mxu0 %v1159
        %1339 = vmatprep.subr.mxu0 0.0
        %1340 = vmatpush1.msra.mxu0 %v1160
        %1341 = vmatprep.subr.mxu0 0.0
        %1342 = vmatpush1.msra.mxu0 %v1161
        %1343 = vmatprep.subr.mxu0 0.0
        %1344 = vmatpush1.msra.mxu0 0.0
        %1345 = vmatprep.subr.mxu0 0.0
        %1346 = vmatpush1.msra.mxu0 0.0
        %1347 = vmatprep.subr.mxu0 0.0
        %1348 = vmatpush1.msra.mxu0 0.0
        %1349 = vmatprep.subr.mxu0 0.0
        %1350 = vmatpush1.msra.mxu0 0.0
        %1351 = vmatprep.subr.mxu0 0.0
        %1352 = vmatpush1.msra.mxu0 0.0
        %1353 = vmatprep.subr.mxu0 0.0
        %1354 = vmatpush1.msra.mxu0 0.0
        %1355 = vmatprep.subr.mxu0 0.0
        %1356 = vmatpush1.msra.mxu0 0.0
        %1357 = vmatprep.subr.mxu0 0.0
        %1358 = vmatpush1.msra.mxu0 0.0
        %1359 = vmatprep.subr.mxu0 0.0
        %1360 = vmatpush1.msra.mxu0 0.0
        %1361 = vmatprep.subr.mxu0 0.0
        %1362 = vmatpush1.msra.mxu0 0.0
        %1363 = vmatprep.subr.mxu0 0.0
        %1364 = vmatpush1.msra.mxu0 0.0
        %1365 = vmatprep.subr.mxu0 0.0
        %1366 = vmatpush1.msra.mxu0 0.0
        %1367 = vmatprep.subr.mxu0 0.0
        %1368 = vmatpush1.msra.mxu0 0.0
        %1369 = vmatprep.subr.mxu0 0.0
        %1370 = vmatpush1.msra.mxu0 0.0
        %1371 = vmatprep.subr.mxu0 0.0
        %1372 = vmatpush1.msra.mxu0 0.0
        %1373 = vmatprep.subr.mxu0 0.0
        %1374 = vmatpush1.msra.mxu0 0.0
        %1375 = vmatprep.subr.mxu0 0.0
        %1376 = vmatpush1.msra.mxu0 0.0
        %1377 = vmatprep.subr.mxu0 0.0
        %1378 = vmatpush1.msra.mxu0 0.0
        %1379 = vmatprep.subr.mxu0 0.0
        %1380 = vmatpush1.msra.mxu0 0.0
        %1381 = vmatprep.subr.mxu0 0.0
        %1382 = vmatpush1.msra.mxu0 0.0
        %1383 = vmatprep.subr.mxu0 0.0
        %1384 = vmatpush1.msra.mxu0 0.0
        %1385 = vmatprep.subr.mxu0 0.0
        %1386 = vmatpush1.msra.mxu0 0.0
        %1387 = vmatprep.subr.mxu0 0.0
        %1388 = vmatpush1.msra.mxu0 0.0
        %1389 = vmatprep.subr.mxu0 0.0
        %1390 = vmatpush1.msra.mxu0 0.0
        %1391 = vmatprep.subr.mxu0 0.0
        %1392 = vmatpush1.msra.mxu0 0.0
        %1393 = vmatprep.subr.mxu0 0.0
        %1394 = vmatpush1.msra.mxu0 0.0
        %1395 = vmatprep.subr.mxu0 0.0
        %1396 = vmatpush1.msra.mxu0 0.0
        %1397 = vmatprep.subr.mxu0 0.0
        %1398 = vmatpush1.msra.mxu0 0.0
        %1399 = vmatprep.mubr.f32.mxu0 0.0
        %1400 = vmatmul.mubr.f32.gmra.mrb[0].mxu0 %v537
        %v1401 = vpop.f32.mrb[0].mxu0
        %v1402 = vadd.f32 %v1186, %v1401
        %v1403 = vpop.f32.mrb[0].mxu0
        %1404 = vdwg.mxu0
        %1405 = vmatprep.subr.mxu0 0.0
        %1406 = vmatpush1.msra.mxu0 %v1162
        %1407 = vmatprep.subr.mxu0 0.0
        %1408 = vmatpush1.msra.mxu0 %v1163
        %1409 = vmatprep.subr.mxu0 0.0
        %1410 = vmatpush1.msra.mxu0 %v1164
        %1411 = vmatprep.subr.mxu0 0.0
        %1412 = vmatpush1.msra.mxu0 %v1165
        %1413 = vmatprep.subr.mxu0 0.0
        %1414 = vmatpush1.msra.mxu0 0.0
        %1415 = vmatprep.subr.mxu0 0.0
        %1416 = vmatpush1.msra.mxu0 0.0
        %1417 = vmatprep.subr.mxu0 0.0
        %1418 = vmatpush1.msra.mxu0 0.0
        %1419 = vmatprep.subr.mxu0 0.0
        %1420 = vmatpush1.msra.mxu0 0.0
        %1421 = vmatprep.subr.mxu0 0.0
        %1422 = vmatpush1.msra.mxu0 0.0
        %1423 = vmatprep.subr.mxu0 0.0
        %1424 = vmatpush1.msra.mxu0 0.0
        %1425 = vmatprep.subr.mxu0 0.0
        %1426 = vmatpush1.msra.mxu0 0.0
        %1427 = vmatprep.subr.mxu0 0.0
        %1428 = vmatpush1.msra.mxu0 0.0
        %1429 = vmatprep.subr.mxu0 0.0
        %1430 = vmatpush1.msra.mxu0 0.0
        %1431 = vmatprep.subr.mxu0 0.0
        %1432 = vmatpush1.msra.mxu0 0.0
        %1433 = vmatprep.subr.mxu0 0.0
        %1434 = vmatpush1.msra.mxu0 0.0
        %1435 = vmatprep.subr.mxu0 0.0
        %1436 = vmatpush1.msra.mxu0 0.0
        %1437 = vmatprep.subr.mxu0 0.0
        %1438 = vmatpush1.msra.mxu0 0.0
        %1439 = vmatprep.subr.mxu0 0.0
        %1440 = vmatpush1.msra.mxu0 0.0
        %1441 = vmatprep.subr.mxu0 0.0
        %1442 = vmatpush1.msra.mxu0 0.0
        %1443 = vmatprep.subr.mxu0 0.0
        %1444 = vmatpush1.msra.mxu0 0.0
        %1445 = vmatprep.subr.mxu0 0.0
        %1446 = vmatpush1.msra.mxu0 0.0
        %1447 = vmatprep.subr.mxu0 0.0
        %1448 = vmatpush1.msra.mxu0 0.0
        %1449 = vmatprep.subr.mxu0 0.0
        %1450 = vmatpush1.msra.mxu0 0.0
        %1451 = vmatprep.subr.mxu0 0.0
        %1452 = vmatpush1.msra.mxu0 0.0
        %1453 = vmatprep.subr.mxu0 0.0
        %1454 = vmatpush1.msra.mxu0 0.0
        %1455 = vmatprep.subr.mxu0 0.0
        %1456 = vmatpush1.msra.mxu0 0.0
        %1457 = vmatprep.subr.mxu0 0.0
        %1458 = vmatpush1.msra.mxu0 0.0
        %1459 = vmatprep.subr.mxu0 0.0
        %1460 = vmatpush1.msra.mxu0 0.0
        %1461 = vmatprep.subr.mxu0 0.0
        %1462 = vmatpush1.msra.mxu0 0.0
        %1463 = vmatprep.subr.mxu0 0.0
        %1464 = vmatpush1.msra.mxu0 0.0
        %1465 = vmatprep.subr.mxu0 0.0
        %1466 = vmatpush1.msra.mxu0 0.0
        %1467 = vmatprep.subr.mxu0 0.0
        %1468 = vmatpush1.msra.mxu0 0.0
        %1469 = vmatprep.mubr.f32.mxu0 0.0
        %1470 = vmatmul.mubr.f32.gmra.mrb[0].mxu0 %v537
        %v1471 = vpop.f32.mrb[0].mxu0
        %v1472 = vadd.f32 %v1190, %v1471
        %v1473 = vpop.f32.mrb[0].mxu0
        %1474 = vdwg.mxu0
        %v1475 = vld [vmem:[%s463] sm:$0xff]
        %vm1476 = vcmask 64512
        %v1478 = vsel %vm1476, %v819, 0
        %v1481 = vsel %vm1476, %v936, 0
        %1483 = vmatprep.subr.mxu0 0.0
        %1484 = vmatpush1.xpose.msra.mxu0 %v1481
        %1485 = vmatprep.subr.mxu0 0.0
        %1486 = vmatpush1.xpose.msra.mxu0 0.0
        %1487 = vmatprep.subr.mxu0 0.0
        %1488 = vmatpush1.xpose.msra.mxu0 0.0
        %1489 = vmatprep.subr.mxu0 0.0
        %1490 = vmatpush1.xpose.msra.mxu0 0.0
        %1491 = vmatprep.subr.mxu0 0.0
        %1492 = vmatpush1.xpose.msra.mxu0 0.0
        %1493 = vmatprep.subr.mxu0 0.0
        %1494 = vmatpush1.xpose.msra.mxu0 0.0
        %1495 = vmatprep.subr.mxu0 0.0
        %1496 = vmatpush1.xpose.msra.mxu0 0.0
        %1497 = vmatprep.subr.mxu0 0.0
        %1498 = vmatpush1.xpose.msra.mxu0 0.0
        %1499 = vmatprep.subr.mxu0 0.0
        %1500 = vmatpush1.xpose.msra.mxu0 0.0
        %1501 = vmatprep.subr.mxu0 0.0
        %1502 = vmatpush1.xpose.msra.mxu0 0.0
        %1503 = vmatprep.subr.mxu0 0.0
        %1504 = vmatpush1.xpose.msra.mxu0 0.0
        %1505 = vmatprep.subr.mxu0 0.0
        %1506 = vmatpush1.xpose.msra.mxu0 0.0
        %1507 = vmatprep.subr.mxu0 0.0
        %1508 = vmatpush1.xpose.msra.mxu0 0.0
        %1509 = vmatprep.subr.mxu0 0.0
        %1510 = vmatpush1.xpose.msra.mxu0 0.0
        %1511 = vmatprep.subr.mxu0 0.0
        %1512 = vmatpush1.xpose.msra.mxu0 0.0
        %1513 = vmatprep.subr.mxu0 0.0
        %1514 = vmatpush1.xpose.msra.mxu0 0.0
        %1515 = vmatprep.subr.mxu0 0.0
        %1516 = vmatpush1.xpose.msra.mxu0 0.0
        %1517 = vmatprep.subr.mxu0 0.0
        %1518 = vmatpush1.xpose.msra.mxu0 0.0
        %1519 = vmatprep.subr.mxu0 0.0
        %1520 = vmatpush1.xpose.msra.mxu0 0.0
        %1521 = vmatprep.subr.mxu0 0.0
        %1522 = vmatpush1.xpose.msra.mxu0 0.0
        %1523 = vmatprep.subr.mxu0 0.0
        %1524 = vmatpush1.xpose.msra.mxu0 0.0
        %1525 = vmatprep.subr.mxu0 0.0
        %1526 = vmatpush1.xpose.msra.mxu0 0.0
        %1527 = vmatprep.subr.mxu0 0.0
        %1528 = vmatpush1.xpose.msra.mxu0 0.0
        %1529 = vmatprep.subr.mxu0 0.0
        %1530 = vmatpush1.xpose.msra.mxu0 0.0
        %1531 = vmatprep.subr.mxu0 0.0
        %1532 = vmatpush1.xpose.msra.mxu0 0.0
        %1533 = vmatprep.subr.mxu0 0.0
        %1534 = vmatpush1.xpose.msra.mxu0 0.0
        %1535 = vmatprep.subr.mxu0 0.0
        %1536 = vmatpush1.xpose.msra.mxu0 0.0
        %1537 = vmatprep.subr.mxu0 0.0
        %1538 = vmatpush1.xpose.msra.mxu0 0.0
        %1539 = vmatprep.subr.mxu0 0.0
        %1540 = vmatpush1.xpose.msra.mxu0 0.0
        %1541 = vmatprep.subr.mxu0 0.0
        %1542 = vmatpush1.xpose.msra.mxu0 0.0
        %1543 = vmatprep.subr.mxu0 0.0
        %1544 = vmatpush1.xpose.msra.mxu0 0.0
        %1545 = vmatprep.subr.mxu0 0.0
        %1546 = vmatpush1.xpose.msra.mxu0 0.0
        %1547 = vmatprep.mubr.f32.mxu0 0.0
        %1548 = vmatmul.mubr.f32.gmra.mrb[0].mxu0 %v1478
        %v1549 = vpop.f32.mrb[0].mxu0
        %v1550 = vadd.f32 0.0, %v1549
        %v1551 = vpop.f32.mrb[0].mxu0
        %1552 = vdwg.mxu0
        %v1554 = vsel %vm1476, %v820, 0
        %v1557 = vsel %vm1476, %v1006, 0
        %1559 = vmatprep.subr.mxu0 0.0
        %1560 = vmatpush1.xpose.msra.mxu0 %v1557
        %1561 = vmatprep.subr.mxu0 0.0
        %1562 = vmatpush1.xpose.msra.mxu0 0.0
        %1563 = vmatprep.subr.mxu0 0.0
        %1564 = vmatpush1.xpose.msra.mxu0 0.0
        %1565 = vmatprep.subr.mxu0 0.0
        %1566 = vmatpush1.xpose.msra.mxu0 0.0
        %1567 = vmatprep.subr.mxu0 0.0
        %1568 = vmatpush1.xpose.msra.mxu0 0.0
        %1569 = vmatprep.subr.mxu0 0.0
        %1570 = vmatpush1.xpose.msra.mxu0 0.0
        %1571 = vmatprep.subr.mxu0 0.0
        %1572 = vmatpush1.xpose.msra.mxu0 0.0
        %1573 = vmatprep.subr.mxu0 0.0
        %1574 = vmatpush1.xpose.msra.mxu0 0.0
        %1575 = vmatprep.subr.mxu0 0.0
        %1576 = vmatpush1.xpose.msra.mxu0 0.0
        %1577 = vmatprep.subr.mxu0 0.0
        %1578 = vmatpush1.xpose.msra.mxu0 0.0
        %1579 = vmatprep.subr.mxu0 0.0
        %1580 = vmatpush1.xpose.msra.mxu0 0.0
        %1581 = vmatprep.subr.mxu0 0.0
        %1582 = vmatpush1.xpose.msra.mxu0 0.0
        %1583 = vmatprep.subr.mxu0 0.0
        %1584 = vmatpush1.xpose.msra.mxu0 0.0
        %1585 = vmatprep.subr.mxu0 0.0
        %1586 = vmatpush1.xpose.msra.mxu0 0.0
        %1587 = vmatprep.subr.mxu0 0.0
        %1588 = vmatpush1.xpose.msra.mxu0 0.0
        %1589 = vmatprep.subr.mxu0 0.0
        %1590 = vmatpush1.xpose.msra.mxu0 0.0
        %1591 = vmatprep.subr.mxu0 0.0
        %1592 = vmatpush1.xpose.msra.mxu0 0.0
        %1593 = vmatprep.subr.mxu0 0.0
        %1594 = vmatpush1.xpose.msra.mxu0 0.0
        %1595 = vmatprep.subr.mxu0 0.0
        %1596 = vmatpush1.xpose.msra.mxu0 0.0
        %1597 = vmatprep.subr.mxu0 0.0
        %1598 = vmatpush1.xpose.msra.mxu0 0.0
        %1599 = vmatprep.subr.mxu0 0.0
        %1600 = vmatpush1.xpose.msra.mxu0 0.0
        %1601 = vmatprep.subr.mxu0 0.0
        %1602 = vmatpush1.xpose.msra.mxu0 0.0
        %1603 = vmatprep.subr.mxu0 0.0
        %1604 = vmatpush1.xpose.msra.mxu0 0.0
        %1605 = vmatprep.subr.mxu0 0.0
        %1606 = vmatpush1.xpose.msra.mxu0 0.0
        %1607 = vmatprep.subr.mxu0 0.0
        %1608 = vmatpush1.xpose.msra.mxu0 0.0
        %1609 = vmatprep.subr.mxu0 0.0
        %1610 = vmatpush1.xpose.msra.mxu0 0.0
        %1611 = vmatprep.subr.mxu0 0.0
        %1612 = vmatpush1.xpose.msra.mxu0 0.0
        %1613 = vmatprep.subr.mxu0 0.0
        %1614 = vmatpush1.xpose.msra.mxu0 0.0
        %1615 = vmatprep.subr.mxu0 0.0
        %1616 = vmatpush1.xpose.msra.mxu0 0.0
        %1617 = vmatprep.subr.mxu0 0.0
        %1618 = vmatpush1.xpose.msra.mxu0 0.0
        %1619 = vmatprep.subr.mxu0 0.0
        %1620 = vmatpush1.xpose.msra.mxu0 0.0
        %1621 = vmatprep.subr.mxu0 0.0
        %1622 = vmatpush1.xpose.msra.mxu0 0.0
        %1623 = vmatprep.mubr.f32.mxu0 0.0
        %1624 = vmatmul.mubr.f32.gmra.mrb[0].mxu0 %v1554
        %v1625 = vpop.f32.mrb[0].mxu0
        %v1626 = vadd.f32 0.0, %v1625
        %v1627 = vpop.f32.mrb[0].mxu0
        %1628 = vdwg.mxu0
        %v1630 = vsel %vm1476, %v821, 0
        %v1633 = vsel %vm1476, %v1076, 0
        %1635 = vmatprep.subr.mxu0 0.0
        %1636 = vmatpush1.xpose.msra.mxu0 %v1633
        %1637 = vmatprep.subr.mxu0 0.0
        %1638 = vmatpush1.xpose.msra.mxu0 0.0
        %1639 = vmatprep.subr.mxu0 0.0
        %1640 = vmatpush1.xpose.msra.mxu0 0.0
        %1641 = vmatprep.subr.mxu0 0.0
        %1642 = vmatpush1.xpose.msra.mxu0 0.0
        %1643 = vmatprep.subr.mxu0 0.0
        %1644 = vmatpush1.xpose.msra.mxu0 0.0
        %1645 = vmatprep.subr.mxu0 0.0
        %1646 = vmatpush1.xpose.msra.mxu0 0.0
        %1647 = vmatprep.subr.mxu0 0.0
        %1648 = vmatpush1.xpose.msra.mxu0 0.0
        %1649 = vmatprep.subr.mxu0 0.0
        %1650 = vmatpush1.xpose.msra.mxu0 0.0
        %1651 = vmatprep.subr.mxu0 0.0
        %1652 = vmatpush1.xpose.msra.mxu0 0.0
        %1653 = vmatprep.subr.mxu0 0.0
        %1654 = vmatpush1.xpose.msra.mxu0 0.0
        %1655 = vmatprep.subr.mxu0 0.0
        %1656 = vmatpush1.xpose.msra.mxu0 0.0
        %1657 = vmatprep.subr.mxu0 0.0
        %1658 = vmatpush1.xpose.msra.mxu0 0.0
        %1659 = vmatprep.subr.mxu0 0.0
        %1660 = vmatpush1.xpose.msra.mxu0 0.0
        %1661 = vmatprep.subr.mxu0 0.0
        %1662 = vmatpush1.xpose.msra.mxu0 0.0
        %1663 = vmatprep.subr.mxu0 0.0
        %1664 = vmatpush1.xpose.msra.mxu0 0.0
        %1665 = vmatprep.subr.mxu0 0.0
        %1666 = vmatpush1.xpose.msra.mxu0 0.0
        %1667 = vmatprep.subr.mxu0 0.0
        %1668 = vmatpush1.xpose.msra.mxu0 0.0
        %1669 = vmatprep.subr.mxu0 0.0
        %1670 = vmatpush1.xpose.msra.mxu0 0.0
        %1671 = vmatprep.subr.mxu0 0.0
        %1672 = vmatpush1.xpose.msra.mxu0 0.0
        %1673 = vmatprep.subr.mxu0 0.0
        %1674 = vmatpush1.xpose.msra.mxu0 0.0
        %1675 = vmatprep.subr.mxu0 0.0
        %1676 = vmatpush1.xpose.msra.mxu0 0.0
        %1677 = vmatprep.subr.mxu0 0.0
        %1678 = vmatpush1.xpose.msra.mxu0 0.0
        %1679 = vmatprep.subr.mxu0 0.0
        %1680 = vmatpush1.xpose.msra.mxu0 0.0
        %1681 = vmatprep.subr.mxu0 0.0
        %1682 = vmatpush1.xpose.msra.mxu0 0.0
        %1683 = vmatprep.subr.mxu0 0.0
        %1684 = vmatpush1.xpose.msra.mxu0 0.0
        %1685 = vmatprep.subr.mxu0 0.0
        %1686 = vmatpush1.xpose.msra.mxu0 0.0
        %1687 = vmatprep.subr.mxu0 0.0
        %1688 = vmatpush1.xpose.msra.mxu0 0.0
        %1689 = vmatprep.subr.mxu0 0.0
        %1690 = vmatpush1.xpose.msra.mxu0 0.0
        %1691 = vmatprep.subr.mxu0 0.0
        %1692 = vmatpush1.xpose.msra.mxu0 0.0
        %1693 = vmatprep.subr.mxu0 0.0
        %1694 = vmatpush1.xpose.msra.mxu0 0.0
        %1695 = vmatprep.subr.mxu0 0.0
        %1696 = vmatpush1.xpose.msra.mxu0 0.0
        %1697 = vmatprep.subr.mxu0 0.0
        %1698 = vmatpush1.xpose.msra.mxu0 0.0
        %1699 = vmatprep.mubr.f32.mxu0 0.0
        %1700 = vmatmul.mubr.f32.gmra.mrb[0].mxu0 %v1630
        %v1701 = vpop.f32.mrb[0].mxu0
        %v1702 = vadd.f32 0.0, %v1701
        %v1703 = vpop.f32.mrb[0].mxu0
        %1704 = vdwg.mxu0
        %v1706 = vsel %vm1476, %v822, 0
        %v1709 = vsel %vm1476, %v1146, 0
        %1711 = vmatprep.subr.mxu0 0.0
        %1712 = vmatpush1.xpose.msra.mxu0 %v1709
        %1713 = vmatprep.subr.mxu0 0.0
        %1714 = vmatpush1.xpose.msra.mxu0 0.0
        %1715 = vmatprep.subr.mxu0 0.0
        %1716 = vmatpush1.xpose.msra.mxu0 0.0
        %1717 = vmatprep.subr.mxu0 0.0
        %1718 = vmatpush1.xpose.msra.mxu0 0.0
        %1719 = vmatprep.subr.mxu0 0.0
        %1720 = vmatpush1.xpose.msra.mxu0 0.0
        %1721 = vmatprep.subr.mxu0 0.0
        %1722 = vmatpush1.xpose.msra.mxu0 0.0
        %1723 = vmatprep.subr.mxu0 0.0
        %1724 = vmatpush1.xpose.msra.mxu0 0.0
        %1725 = vmatprep.subr.mxu0 0.0
        %1726 = vmatpush1.xpose.msra.mxu0 0.0
        %1727 = vmatprep.subr.mxu0 0.0
        %1728 = vmatpush1.xpose.msra.mxu0 0.0
        %1729 = vmatprep.subr.mxu0 0.0
        %1730 = vmatpush1.xpose.msra.mxu0 0.0
        %1731 = vmatprep.subr.mxu0 0.0
        %1732 = vmatpush1.xpose.msra.mxu0 0.0
        %1733 = vmatprep.subr.mxu0 0.0
        %1734 = vmatpush1.xpose.msra.mxu0 0.0
        %1735 = vmatprep.subr.mxu0 0.0
        %1736 = vmatpush1.xpose.msra.mxu0 0.0
        %1737 = vmatprep.subr.mxu0 0.0
        %1738 = vmatpush1.xpose.msra.mxu0 0.0
        %1739 = vmatprep.subr.mxu0 0.0
        %1740 = vmatpush1.xpose.msra.mxu0 0.0
        %1741 = vmatprep.subr.mxu0 0.0
        %1742 = vmatpush1.xpose.msra.mxu0 0.0
        %1743 = vmatprep.subr.mxu0 0.0
        %1744 = vmatpush1.xpose.msra.mxu0 0.0
        %1745 = vmatprep.subr.mxu0 0.0
        %1746 = vmatpush1.xpose.msra.mxu0 0.0
        %1747 = vmatprep.subr.mxu0 0.0
        %1748 = vmatpush1.xpose.msra.mxu0 0.0
        %1749 = vmatprep.subr.mxu0 0.0
        %1750 = vmatpush1.xpose.msra.mxu0 0.0
        %1751 = vmatprep.subr.mxu0 0.0
        %1752 = vmatpush1.xpose.msra.mxu0 0.0
        %1753 = vmatprep.subr.mxu0 0.0
        %1754 = vmatpush1.xpose.msra.mxu0 0.0
        %1755 = vmatprep.subr.mxu0 0.0
        %1756 = vmatpush1.xpose.msra.mxu0 0.0
        %1757 = vmatprep.subr.mxu0 0.0
        %1758 = vmatpush1.xpose.msra.mxu0 0.0
        %1759 = vmatprep.subr.mxu0 0.0
        %1760 = vmatpush1.xpose.msra.mxu0 0.0
        %1761 = vmatprep.subr.mxu0 0.0
        %1762 = vmatpush1.xpose.msra.mxu0 0.0
        %1763 = vmatprep.subr.mxu0 0.0
        %1764 = vmatpush1.xpose.msra.mxu0 0.0
        %1765 = vmatprep.subr.mxu0 0.0
        %1766 = vmatpush1.xpose.msra.mxu0 0.0
        %1767 = vmatprep.subr.mxu0 0.0
        %1768 = vmatpush1.xpose.msra.mxu0 0.0
        %1769 = vmatprep.subr.mxu0 0.0
        %1770 = vmatpush1.xpose.msra.mxu0 0.0
        %1771 = vmatprep.subr.mxu0 0.0
        %1772 = vmatpush1.xpose.msra.mxu0 0.0
        %1773 = vmatprep.subr.mxu0 0.0
        %1774 = vmatpush1.xpose.msra.mxu0 0.0
        %1775 = vmatprep.mubr.f32.mxu0 0.0
        %1776 = vmatmul.mubr.f32.gmra.mrb[0].mxu0 %v1706
        %v1777 = vpop.f32.mrb[0].mxu0
        %v1778 = vadd.f32 0.0, %v1777
        %v1779 = vpop.f32.mrb[0].mxu0
        %1780 = vdwg.mxu0
        %vm1781 = vcmp.eq.f32.partialorder %v1475, 0.0
        %v1782 = vsel %vm1781, 1, 0
        %vm1783 = vcmp.eq.s32.totalorder %v1782, 1
        %v1784 = vsel %vm1783, -1e+09, %v1550
        %v1785 = vsel %vm1783, -1e+09, %v1626
        %v1786 = vsel %vm1783, -1e+09, %v1702
        %v1787 = vsel %vm1783, -1e+09, %v1778
        %v1788 = vsel %vm1476, %v1784, -inf
        %1789 = vmax.xlane.f32.xlu0 %v1788
        %v1790 = vpop.xlane.xlu0 %1789
        %v1791 = vsel %vm1476, %v1785, -inf
        %1792 = vmax.xlane.f32.xlu0 %v1791
        %v1793 = vpop.xlane.xlu0 %1792
        %v1794 = vsel %vm1476, %v1786, -inf
        %1795 = vmax.xlane.f32.xlu0 %v1794
        %v1796 = vpop.xlane.xlu0 %1795
        %v1797 = vsel %vm1476, %v1787, -inf
        %1798 = vmax.xlane.f32.xlu0 %v1797
        %v1799 = vpop.xlane.xlu0 %1798
        %v1800 = vsub.f32 %v1784, %v1790
        %v1801 = vsub.f32 %v1785, %v1793
        %v1802 = vsub.f32 %v1786, %v1796
        %v1803 = vsub.f32 %v1787, %v1799
        %v1804 = vmul.f32 %v1800, 1.442695
        %v1805 = vpow.pop %v1804
        %v1806 = vmul.f32 %v1801, 1.442695
        %v1807 = vpow.pop %v1806
        %v1808 = vmul.f32 %v1802, 1.442695
        %v1809 = vpow.pop %v1808
        %v1810 = vmul.f32 %v1803, 1.442695
        %v1811 = vpow.pop %v1810
        %v1812 = vsel %vm1476, %v1805, 0.0
        %1813 = vadd.xlane.f32.xlu0 %v1812
        %v1814 = vpop.xlane.xlu0 %1813
        %v1815 = vsel %vm1476, %v1807, 0.0
        %1816 = vadd.xlane.f32.xlu0 %v1815
        %v1817 = vpop.xlane.xlu0 %1816
        %v1818 = vsel %vm1476, %v1809, 0.0
        %1819 = vadd.xlane.f32.xlu0 %v1818
        %v1820 = vpop.xlane.xlu0 %1819
        %v1821 = vsel %vm1476, %v1811, 0.0
        %1822 = vadd.xlane.f32.xlu0 %v1821
        %v1823 = vpop.xlane.xlu0 %1822
        %v1824 = vrcp.pop %v1814
        %v1825 = vrcp.pop %v1817
        %v1826 = vrcp.pop %v1820
        %v1827 = vrcp.pop %v1823
        %v1828 = vmul.f32 %v1805, %v1824
        %v1829 = vmul.f32 %v1807, %v1825
        %v1830 = vmul.f32 %v1809, %v1826
        %v1831 = vmul.f32 %v1811, %v1827
        %v1833 = vsel %vm1476, %v1828, 0
        %1835 = vmatprep.subr.mxu0 0.0
        %1836 = vmatpush1.msra.mxu0 %v1262
        %1837 = vmatprep.subr.mxu0 0.0
        %1838 = vmatpush1.msra.mxu0 0.0
        %1839 = vmatprep.subr.mxu0 0.0
        %1840 = vmatpush1.msra.mxu0 0.0
        %1841 = vmatprep.subr.mxu0 0.0
        %1842 = vmatpush1.msra.mxu0 0.0
        %1843 = vmatprep.subr.mxu0 0.0
        %1844 = vmatpush1.msra.mxu0 0.0
        %1845 = vmatprep.subr.mxu0 0.0
        %1846 = vmatpush1.msra.mxu0 0.0
        %1847 = vmatprep.subr.mxu0 0.0
        %1848 = vmatpush1.msra.mxu0 0.0
        %1849 = vmatprep.subr.mxu0 0.0
        %1850 = vmatpush1.msra.mxu0 0.0
        %1851 = vmatprep.subr.mxu0 0.0
        %1852 = vmatpush1.msra.mxu0 0.0
        %1853 = vmatprep.subr.mxu0 0.0
        %1854 = vmatpush1.msra.mxu0 0.0
        %1855 = vmatprep.subr.mxu0 0.0
        %1856 = vmatpush1.msra.mxu0 0.0
        %1857 = vmatprep.subr.mxu0 0.0
        %1858 = vmatpush1.msra.mxu0 0.0
        %1859 = vmatprep.subr.mxu0 0.0
        %1860 = vmatpush1.msra.mxu0 0.0
        %1861 = vmatprep.subr.mxu0 0.0
        %1862 = vmatpush1.msra.mxu0 0.0
        %1863 = vmatprep.subr.mxu0 0.0
        %1864 = vmatpush1.msra.mxu0 0.0
        %1865 = vmatprep.subr.mxu0 0.0
        %1866 = vmatpush1.msra.mxu0 0.0
        %1867 = vmatprep.subr.mxu0 0.0
        %1868 = vmatpush1.msra.mxu0 0.0
        %1869 = vmatprep.subr.mxu0 0.0
        %1870 = vmatpush1.msra.mxu0 0.0
        %1871 = vmatprep.subr.mxu0 0.0
        %1872 = vmatpush1.msra.mxu0 0.0
        %1873 = vmatprep.subr.mxu0 0.0
        %1874 = vmatpush1.msra.mxu0 0.0
        %1875 = vmatprep.subr.mxu0 0.0
        %1876 = vmatpush1.msra.mxu0 0.0
        %1877 = vmatprep.subr.mxu0 0.0
        %1878 = vmatpush1.msra.mxu0 0.0
        %1879 = vmatprep.subr.mxu0 0.0
        %1880 = vmatpush1.msra.mxu0 0.0
        %1881 = vmatprep.subr.mxu0 0.0
        %1882 = vmatpush1.msra.mxu0 0.0
        %1883 = vmatprep.subr.mxu0 0.0
        %1884 = vmatpush1.msra.mxu0 0.0
        %1885 = vmatprep.subr.mxu0 0.0
        %1886 = vmatpush1.msra.mxu0 0.0
        %1887 = vmatprep.subr.mxu0 0.0
        %1888 = vmatpush1.msra.mxu0 0.0
        %1889 = vmatprep.subr.mxu0 0.0
        %1890 = vmatpush1.msra.mxu0 0.0
        %1891 = vmatprep.subr.mxu0 0.0
        %1892 = vmatpush1.msra.mxu0 0.0
        %1893 = vmatprep.subr.mxu0 0.0
        %1894 = vmatpush1.msra.mxu0 0.0
        %1895 = vmatprep.subr.mxu0 0.0
        %1896 = vmatpush1.msra.mxu0 0.0
        %1897 = vmatprep.subr.mxu0 0.0
        %1898 = vmatpush1.msra.mxu0 0.0
        %1899 = vmatprep.mubr.f32.mxu0 0.0
        %1900 = vmatmul.mubr.f32.gmra.mrb[0].mxu0 %v1833
        %v1901 = vpop.f32.mrb[0].mxu0
        %v1902 = vadd.f32 0.0, %v1901
        %v1903 = vpop.f32.mrb[0].mxu0
        %1904 = vdwg.mxu0
        %v1906 = vsel %vm1476, %v1829, 0
        %1908 = vmatprep.subr.mxu0 0.0
        %1909 = vmatpush1.msra.mxu0 %v1332
        %1910 = vmatprep.subr.mxu0 0.0
        %1911 = vmatpush1.msra.mxu0 0.0
        %1912 = vmatprep.subr.mxu0 0.0
        %1913 = vmatpush1.msra.mxu0 0.0
        %1914 = vmatprep.subr.mxu0 0.0
        %1915 = vmatpush1.msra.mxu0 0.0
        %1916 = vmatprep.subr.mxu0 0.0
        %1917 = vmatpush1.msra.mxu0 0.0
        %1918 = vmatprep.subr.mxu0 0.0
        %1919 = vmatpush1.msra.mxu0 0.0
        %1920 = vmatprep.subr.mxu0 0.0
        %1921 = vmatpush1.msra.mxu0 0.0
        %1922 = vmatprep.subr.mxu0 0.0
        %1923 = vmatpush1.msra.mxu0 0.0
        %1924 = vmatprep.subr.mxu0 0.0
        %1925 = vmatpush1.msra.mxu0 0.0
        %1926 = vmatprep.subr.mxu0 0.0
        %1927 = vmatpush1.msra.mxu0 0.0
        %1928 = vmatprep.subr.mxu0 0.0
        %1929 = vmatpush1.msra.mxu0 0.0
        %1930 = vmatprep.subr.mxu0 0.0
        %1931 = vmatpush1.msra.mxu0 0.0
        %1932 = vmatprep.subr.mxu0 0.0
        %1933 = vmatpush1.msra.mxu0 0.0
        %1934 = vmatprep.subr.mxu0 0.0
        %1935 = vmatpush1.msra.mxu0 0.0
        %1936 = vmatprep.subr.mxu0 0.0
        %1937 = vmatpush1.msra.mxu0 0.0
        %1938 = vmatprep.subr.mxu0 0.0
        %1939 = vmatpush1.msra.mxu0 0.0
        %1940 = vmatprep.subr.mxu0 0.0
        %1941 = vmatpush1.msra.mxu0 0.0
        %1942 = vmatprep.subr.mxu0 0.0
        %1943 = vmatpush1.msra.mxu0 0.0
        %1944 = vmatprep.subr.mxu0 0.0
        %1945 = vmatpush1.msra.mxu0 0.0
        %1946 = vmatprep.subr.mxu0 0.0
        %1947 = vmatpush1.msra.mxu0 0.0
        %1948 = vmatprep.subr.mxu0 0.0
        %1949 = vmatpush1.msra.mxu0 0.0
        %1950 = vmatprep.subr.mxu0 0.0
        %1951 = vmatpush1.msra.mxu0 0.0
        %1952 = vmatprep.subr.mxu0 0.0
        %1953 = vmatpush1.msra.mxu0 0.0
        %1954 = vmatprep.subr.mxu0 0.0
        %1955 = vmatpush1.msra.mxu0 0.0
        %1956 = vmatprep.subr.mxu0 0.0
        %1957 = vmatpush1.msra.mxu0 0.0
        %1958 = vmatprep.subr.mxu0 0.0
        %1959 = vmatpush1.msra.mxu0 0.0
        %1960 = vmatprep.subr.mxu0 0.0
        %1961 = vmatpush1.msra.mxu0 0.0
        %1962 = vmatprep.subr.mxu0 0.0
        %1963 = vmatpush1.msra.mxu0 0.0
        %1964 = vmatprep.subr.mxu0 0.0
        %1965 = vmatpush1.msra.mxu0 0.0
        %1966 = vmatprep.subr.mxu0 0.0
        %1967 = vmatpush1.msra.mxu0 0.0
        %1968 = vmatprep.subr.mxu0 0.0
        %1969 = vmatpush1.msra.mxu0 0.0
        %1970 = vmatprep.subr.mxu0 0.0
        %1971 = vmatpush1.msra.mxu0 0.0
        %1972 = vmatprep.mubr.f32.mxu0 0.0
        %1973 = vmatmul.mubr.f32.gmra.mrb[0].mxu0 %v1906
        %v1974 = vpop.f32.mrb[0].mxu0
        %v1975 = vadd.f32 0.0, %v1974
        %v1976 = vpop.f32.mrb[0].mxu0
        %1977 = vdwg.mxu0
        %v1979 = vsel %vm1476, %v1830, 0
        %1981 = vmatprep.subr.mxu0 0.0
        %1982 = vmatpush1.msra.mxu0 %v1402
        %1983 = vmatprep.subr.mxu0 0.0
        %1984 = vmatpush1.msra.mxu0 0.0
        %1985 = vmatprep.subr.mxu0 0.0
        %1986 = vmatpush1.msra.mxu0 0.0
        %1987 = vmatprep.subr.mxu0 0.0
        %1988 = vmatpush1.msra.mxu0 0.0
        %1989 = vmatprep.subr.mxu0 0.0
        %1990 = vmatpush1.msra.mxu0 0.0
        %1991 = vmatprep.subr.mxu0 0.0
        %1992 = vmatpush1.msra.mxu0 0.0
        %1993 = vmatprep.subr.mxu0 0.0
        %1994 = vmatpush1.msra.mxu0 0.0
        %1995 = vmatprep.subr.mxu0 0.0
        %1996 = vmatpush1.msra.mxu0 0.0
        %1997 = vmatprep.subr.mxu0 0.0
        %1998 = vmatpush1.msra.mxu0 0.0
        %1999 = vmatprep.subr.mxu0 0.0
        %2000 = vmatpush1.msra.mxu0 0.0
        %2001 = vmatprep.subr.mxu0 0.0
        %2002 = vmatpush1.msra.mxu0 0.0
        %2003 = vmatprep.subr.mxu0 0.0
        %2004 = vmatpush1.msra.mxu0 0.0
        %2005 = vmatprep.subr.mxu0 0.0
        %2006 = vmatpush1.msra.mxu0 0.0
        %2007 = vmatprep.subr.mxu0 0.0
        %2008 = vmatpush1.msra.mxu0 0.0
        %2009 = vmatprep.subr.mxu0 0.0
        %2010 = vmatpush1.msra.mxu0 0.0
        %2011 = vmatprep.subr.mxu0 0.0
        %2012 = vmatpush1.msra.mxu0 0.0
        %2013 = vmatprep.subr.mxu0 0.0
        %2014 = vmatpush1.msra.mxu0 0.0
        %2015 = vmatprep.subr.mxu0 0.0
        %2016 = vmatpush1.msra.mxu0 0.0
        %2017 = vmatprep.subr.mxu0 0.0
        %2018 = vmatpush1.msra.mxu0 0.0
        %2019 = vmatprep.subr.mxu0 0.0
        %2020 = vmatpush1.msra.mxu0 0.0
        %2021 = vmatprep.subr.mxu0 0.0
        %2022 = vmatpush1.msra.mxu0 0.0
        %2023 = vmatprep.subr.mxu0 0.0
        %2024 = vmatpush1.msra.mxu0 0.0
        %2025 = vmatprep.subr.mxu0 0.0
        %2026 = vmatpush1.msra.mxu0 0.0
        %2027 = vmatprep.subr.mxu0 0.0
        %2028 = vmatpush1.msra.mxu0 0.0
        %2029 = vmatprep.subr.mxu0 0.0
        %2030 = vmatpush1.msra.mxu0 0.0
        %2031 = vmatprep.subr.mxu0 0.0
        %2032 = vmatpush1.msra.mxu0 0.0
        %2033 = vmatprep.subr.mxu0 0.0
        %2034 = vmatpush1.msra.mxu0 0.0
        %2035 = vmatprep.subr.mxu0 0.0
        %2036 = vmatpush1.msra.mxu0 0.0
        %2037 = vmatprep.subr.mxu0 0.0
        %2038 = vmatpush1.msra.mxu0 0.0
        %2039 = vmatprep.subr.mxu0 0.0
        %2040 = vmatpush1.msra.mxu0 0.0
        %2041 = vmatprep.subr.mxu0 0.0
        %2042 = vmatpush1.msra.mxu0 0.0
        %2043 = vmatprep.subr.mxu0 0.0
        %2044 = vmatpush1.msra.mxu0 0.0
        %2045 = vmatprep.mubr.f32.mxu0 0.0
        %2046 = vmatmul.mubr.f32.gmra.mrb[0].mxu0 %v1979
        %v2047 = vpop.f32.mrb[0].mxu0
        %v2048 = vadd.f32 0.0, %v2047
        %v2049 = vpop.f32.mrb[0].mxu0
        %2050 = vdwg.mxu0
        %v2052 = vsel %vm1476, %v1831, 0
        %2054 = vmatprep.subr.mxu0 0.0
        %2055 = vmatpush1.msra.mxu0 %v1472
        %2056 = vmatprep.subr.mxu0 0.0
        %2057 = vmatpush1.msra.mxu0 0.0
        %2058 = vmatprep.subr.mxu0 0.0
        %2059 = vmatpush1.msra.mxu0 0.0
        %2060 = vmatprep.subr.mxu0 0.0
        %2061 = vmatpush1.msra.mxu0 0.0
        %2062 = vmatprep.subr.mxu0 0.0
        %2063 = vmatpush1.msra.mxu0 0.0
        %2064 = vmatprep.subr.mxu0 0.0
        %2065 = vmatpush1.msra.mxu0 0.0
        %2066 = vmatprep.subr.mxu0 0.0
        %2067 = vmatpush1.msra.mxu0 0.0
        %2068 = vmatprep.subr.mxu0 0.0
        %2069 = vmatpush1.msra.mxu0 0.0
        %2070 = vmatprep.subr.mxu0 0.0
        %2071 = vmatpush1.msra.mxu0 0.0
        %2072 = vmatprep.subr.mxu0 0.0
        %2073 = vmatpush1.msra.mxu0 0.0
        %2074 = vmatprep.subr.mxu0 0.0
        %2075 = vmatpush1.msra.mxu0 0.0
        %2076 = vmatprep.subr.mxu0 0.0
        %2077 = vmatpush1.msra.mxu0 0.0
        %2078 = vmatprep.subr.mxu0 0.0
        %2079 = vmatpush1.msra.mxu0 0.0
        %2080 = vmatprep.subr.mxu0 0.0
        %2081 = vmatpush1.msra.mxu0 0.0
        %2082 = vmatprep.subr.mxu0 0.0
        %2083 = vmatpush1.msra.mxu0 0.0
        %2084 = vmatprep.subr.mxu0 0.0
        %2085 = vmatpush1.msra.mxu0 0.0
        %2086 = vmatprep.subr.mxu0 0.0
        %2087 = vmatpush1.msra.mxu0 0.0
        %2088 = vmatprep.subr.mxu0 0.0
        %2089 = vmatpush1.msra.mxu0 0.0
        %2090 = vmatprep.subr.mxu0 0.0
        %2091 = vmatpush1.msra.mxu0 0.0
        %2092 = vmatprep.subr.mxu0 0.0
        %2093 = vmatpush1.msra.mxu0 0.0
        %2094 = vmatprep.subr.mxu0 0.0
        %2095 = vmatpush1.msra.mxu0 0.0
        %2096 = vmatprep.subr.mxu0 0.0
        %2097 = vmatpush1.msra.mxu0 0.0
        %2098 = vmatprep.subr.mxu0 0.0
        %2099 = vmatpush1.msra.mxu0 0.0
        %2100 = vmatprep.subr.mxu0 0.0
        %2101 = vmatpush1.msra.mxu0 0.0
        %2102 = vmatprep.subr.mxu0 0.0
        %2103 = vmatpush1.msra.mxu0 0.0
        %2104 = vmatprep.subr.mxu0 0.0
        %2105 = vmatpush1.msra.mxu0 0.0
        %2106 = vmatprep.subr.mxu0 0.0
        %2107 = vmatpush1.msra.mxu0 0.0
        %2108 = vmatprep.subr.mxu0 0.0
        %2109 = vmatpush1.msra.mxu0 0.0
        %2110 = vmatprep.subr.mxu0 0.0
        %2111 = vmatpush1.msra.mxu0 0.0
        %2112 = vmatprep.subr.mxu0 0.0
        %2113 = vmatpush1.msra.mxu0 0.0
        %2114 = vmatprep.subr.mxu0 0.0
        %2115 = vmatpush1.msra.mxu0 0.0
        %2116 = vmatprep.subr.mxu0 0.0
        %2117 = vmatpush1.msra.mxu0 0.0
        %2118 = vmatprep.mubr.f32.mxu0 0.0
        %2119 = vmatmul.mubr.f32.gmra.mrb[0].mxu0 %v2052
        %v2120 = vpop.f32.mrb[0].mxu0
        %v2121 = vadd.f32 0.0, %v2120
        %v2122 = vpop.f32.mrb[0].mxu0
        %2123 = vdwg.mxu0
        %v2124 = vld [vmem:[%s6] sm:$0xff]
        %v2125 = vld [vmem:[%s6 + $0x8] sm:$0xff]
        %v2126 = vld [vmem:[%s6 + $0x10] sm:$0xff]
        %v2127 = vld [vmem:[%s6 + $0x18] sm:$0xff]
        %v2129 = vsel %vm1476, %v1902, 0
        %2131 = vmatprep.subr.mxu0 0.0
        %2132 = vmatpush1.msra.mxu0 %v2124
        %2133 = vmatprep.subr.mxu0 0.0
        %2134 = vmatpush1.msra.mxu0 0.0
        %2135 = vmatprep.subr.mxu0 0.0
        %2136 = vmatpush1.msra.mxu0 0.0
        %2137 = vmatprep.subr.mxu0 0.0
        %2138 = vmatpush1.msra.mxu0 0.0
        %2139 = vmatprep.subr.mxu0 0.0
        %2140 = vmatpush1.msra.mxu0 0.0
        %2141 = vmatprep.subr.mxu0 0.0
        %2142 = vmatpush1.msra.mxu0 0.0
        %2143 = vmatprep.subr.mxu0 0.0
        %2144 = vmatpush1.msra.mxu0 0.0
        %2145 = vmatprep.subr.mxu0 0.0
        %2146 = vmatpush1.msra.mxu0 0.0
        %2147 = vmatprep.subr.mxu0 0.0
        %2148 = vmatpush1.msra.mxu0 0.0
        %2149 = vmatprep.subr.mxu0 0.0
        %2150 = vmatpush1.msra.mxu0 0.0
        %2151 = vmatprep.subr.mxu0 0.0
        %2152 = vmatpush1.msra.mxu0 0.0
        %2153 = vmatprep.subr.mxu0 0.0
        %2154 = vmatpush1.msra.mxu0 0.0
        %2155 = vmatprep.subr.mxu0 0.0
        %2156 = vmatpush1.msra.mxu0 0.0
        %2157 = vmatprep.subr.mxu0 0.0
        %2158 = vmatpush1.msra.mxu0 0.0
        %2159 = vmatprep.subr.mxu0 0.0
        %2160 = vmatpush1.msra.mxu0 0.0
        %2161 = vmatprep.subr.mxu0 0.0
        %2162 = vmatpush1.msra.mxu0 0.0
        %2163 = vmatprep.subr.mxu0 0.0
        %2164 = vmatpush1.msra.mxu0 0.0
        %2165 = vmatprep.subr.mxu0 0.0
        %2166 = vmatpush1.msra.mxu0 0.0
        %2167 = vmatprep.subr.mxu0 0.0
        %2168 = vmatpush1.msra.mxu0 0.0
        %2169 = vmatprep.subr.mxu0 0.0
        %2170 = vmatpush1.msra.mxu0 0.0
        %2171 = vmatprep.subr.mxu0 0.0
        %2172 = vmatpush1.msra.mxu0 0.0
        %2173 = vmatprep.subr.mxu0 0.0
        %2174 = vmatpush1.msra.mxu0 0.0
        %2175 = vmatprep.subr.mxu0 0.0
        %2176 = vmatpush1.msra.mxu0 0.0
        %2177 = vmatprep.subr.mxu0 0.0
        %2178 = vmatpush1.msra.mxu0 0.0
        %2179 = vmatprep.subr.mxu0 0.0
        %2180 = vmatpush1.msra.mxu0 0.0
        %2181 = vmatprep.subr.mxu0 0.0
        %2182 = vmatpush1.msra.mxu0 0.0
        %2183 = vmatprep.subr.mxu0 0.0
        %2184 = vmatpush1.msra.mxu0 0.0
        %2185 = vmatprep.subr.mxu0 0.0
        %2186 = vmatpush1.msra.mxu0 0.0
        %2187 = vmatprep.subr.mxu0 0.0
        %2188 = vmatpush1.msra.mxu0 0.0
        %2189 = vmatprep.subr.mxu0 0.0
        %2190 = vmatpush1.msra.mxu0 0.0
        %2191 = vmatprep.subr.mxu0 0.0
        %2192 = vmatpush1.msra.mxu0 0.0
        %2193 = vmatprep.subr.mxu0 0.0
        %2194 = vmatpush1.msra.mxu0 0.0
        %2195 = vmatprep.mubr.f32.mxu0 0.0
        %2196 = vmatmul.mubr.f32.gmra.mrb[0].mxu0 %v2129
        %v2197 = vpop.f32.mrb[0].mxu0
        %v2198 = vadd.f32 0.0, %v2197
        %v2199 = vpop.f32.mrb[0].mxu0
        %2200 = vdwg.mxu0
        %v2202 = vsel %vm1476, %v1975, 0
        %2204 = vmatprep.subr.mxu0 0.0
        %2205 = vmatpush1.msra.mxu0 %v2125
        %2206 = vmatprep.subr.mxu0 0.0
        %2207 = vmatpush1.msra.mxu0 0.0
        %2208 = vmatprep.subr.mxu0 0.0
        %2209 = vmatpush1.msra.mxu0 0.0
        %2210 = vmatprep.subr.mxu0 0.0
        %2211 = vmatpush1.msra.mxu0 0.0
        %2212 = vmatprep.subr.mxu0 0.0
        %2213 = vmatpush1.msra.mxu0 0.0
        %2214 = vmatprep.subr.mxu0 0.0
        %2215 = vmatpush1.msra.mxu0 0.0
        %2216 = vmatprep.subr.mxu0 0.0
        %2217 = vmatpush1.msra.mxu0 0.0
        %2218 = vmatprep.subr.mxu0 0.0
        %2219 = vmatpush1.msra.mxu0 0.0
        %2220 = vmatprep.subr.mxu0 0.0
        %2221 = vmatpush1.msra.mxu0 0.0
        %2222 = vmatprep.subr.mxu0 0.0
        %2223 = vmatpush1.msra.mxu0 0.0
        %2224 = vmatprep.subr.mxu0 0.0
        %2225 = vmatpush1.msra.mxu0 0.0
        %2226 = vmatprep.subr.mxu0 0.0
        %2227 = vmatpush1.msra.mxu0 0.0
        %2228 = vmatprep.subr.mxu0 0.0
        %2229 = vmatpush1.msra.mxu0 0.0
        %2230 = vmatprep.subr.mxu0 0.0
        %2231 = vmatpush1.msra.mxu0 0.0
        %2232 = vmatprep.subr.mxu0 0.0
        %2233 = vmatpush1.msra.mxu0 0.0
        %2234 = vmatprep.subr.mxu0 0.0
        %2235 = vmatpush1.msra.mxu0 0.0
        %2236 = vmatprep.subr.mxu0 0.0
        %2237 = vmatpush1.msra.mxu0 0.0
        %2238 = vmatprep.subr.mxu0 0.0
        %2239 = vmatpush1.msra.mxu0 0.0
        %2240 = vmatprep.subr.mxu0 0.0
        %2241 = vmatpush1.msra.mxu0 0.0
        %2242 = vmatprep.subr.mxu0 0.0
        %2243 = vmatpush1.msra.mxu0 0.0
        %2244 = vmatprep.subr.mxu0 0.0
        %2245 = vmatpush1.msra.mxu0 0.0
        %2246 = vmatprep.subr.mxu0 0.0
        %2247 = vmatpush1.msra.mxu0 0.0
        %2248 = vmatprep.subr.mxu0 0.0
        %2249 = vmatpush1.msra.mxu0 0.0
        %2250 = vmatprep.subr.mxu0 0.0
        %2251 = vmatpush1.msra.mxu0 0.0
        %2252 = vmatprep.subr.mxu0 0.0
        %2253 = vmatpush1.msra.mxu0 0.0
        %2254 = vmatprep.subr.mxu0 0.0
        %2255 = vmatpush1.msra.mxu0 0.0
        %2256 = vmatprep.subr.mxu0 0.0
        %2257 = vmatpush1.msra.mxu0 0.0
        %2258 = vmatprep.subr.mxu0 0.0
        %2259 = vmatpush1.msra.mxu0 0.0
        %2260 = vmatprep.subr.mxu0 0.0
        %2261 = vmatpush1.msra.mxu0 0.0
        %2262 = vmatprep.subr.mxu0 0.0
        %2263 = vmatpush1.msra.mxu0 0.0
        %2264 = vmatprep.subr.mxu0 0.0
        %2265 = vmatpush1.msra.mxu0 0.0
        %2266 = vmatprep.subr.mxu0 0.0
        %2267 = vmatpush1.msra.mxu0 0.0
        %2268 = vmatprep.mubr.f32.mxu0 0.0
        %2269 = vmatmul.mubr.f32.gmra.mrb[0].mxu0 %v2202
        %v2270 = vpop.f32.mrb[0].mxu0
        %v2271 = vadd.f32 0.0, %v2270
        %v2272 = vpop.f32.mrb[0].mxu0
        %2273 = vdwg.mxu0
        %v2275 = vsel %vm1476, %v2048, 0
        %2277 = vmatprep.subr.mxu0 0.0
        %2278 = vmatpush1.msra.mxu0 %v2126
        %2279 = vmatprep.subr.mxu0 0.0
        %2280 = vmatpush1.msra.mxu0 0.0
        %2281 = vmatprep.subr.mxu0 0.0
        %2282 = vmatpush1.msra.mxu0 0.0
        %2283 = vmatprep.subr.mxu0 0.0
        %2284 = vmatpush1.msra.mxu0 0.0
        %2285 = vmatprep.subr.mxu0 0.0
        %2286 = vmatpush1.msra.mxu0 0.0
        %2287 = vmatprep.subr.mxu0 0.0
        %2288 = vmatpush1.msra.mxu0 0.0
        %2289 = vmatprep.subr.mxu0 0.0
        %2290 = vmatpush1.msra.mxu0 0.0
        %2291 = vmatprep.subr.mxu0 0.0
        %2292 = vmatpush1.msra.mxu0 0.0
        %2293 = vmatprep.subr.mxu0 0.0
        %2294 = vmatpush1.msra.mxu0 0.0
        %2295 = vmatprep.subr.mxu0 0.0
        %2296 = vmatpush1.msra.mxu0 0.0
        %2297 = vmatprep.subr.mxu0 0.0
        %2298 = vmatpush1.msra.mxu0 0.0
        %2299 = vmatprep.subr.mxu0 0.0
        %2300 = vmatpush1.msra.mxu0 0.0
        %2301 = vmatprep.subr.mxu0 0.0
        %2302 = vmatpush1.msra.mxu0 0.0
        %2303 = vmatprep.subr.mxu0 0.0
        %2304 = vmatpush1.msra.mxu0 0.0
        %2305 = vmatprep.subr.mxu0 0.0
        %2306 = vmatpush1.msra.mxu0 0.0
        %2307 = vmatprep.subr.mxu0 0.0
        %2308 = vmatpush1.msra.mxu0 0.0
        %2309 = vmatprep.subr.mxu0 0.0
        %2310 = vmatpush1.msra.mxu0 0.0
        %2311 = vmatprep.subr.mxu0 0.0
        %2312 = vmatpush1.msra.mxu0 0.0
        %2313 = vmatprep.subr.mxu0 0.0
        %2314 = vmatpush1.msra.mxu0 0.0
        %2315 = vmatprep.subr.mxu0 0.0
        %2316 = vmatpush1.msra.mxu0 0.0
        %2317 = vmatprep.subr.mxu0 0.0
        %2318 = vmatpush1.msra.mxu0 0.0
        %2319 = vmatprep.subr.mxu0 0.0
        %2320 = vmatpush1.msra.mxu0 0.0
        %2321 = vmatprep.subr.mxu0 0.0
        %2322 = vmatpush1.msra.mxu0 0.0
        %2323 = vmatprep.subr.mxu0 0.0
        %2324 = vmatpush1.msra.mxu0 0.0
        %2325 = vmatprep.subr.mxu0 0.0
        %2326 = vmatpush1.msra.mxu0 0.0
        %2327 = vmatprep.subr.mxu0 0.0
        %2328 = vmatpush1.msra.mxu0 0.0
        %2329 = vmatprep.subr.mxu0 0.0
        %2330 = vmatpush1.msra.mxu0 0.0
        %2331 = vmatprep.subr.mxu0 0.0
        %2332 = vmatpush1.msra.mxu0 0.0
        %2333 = vmatprep.subr.mxu0 0.0
        %2334 = vmatpush1.msra.mxu0 0.0
        %2335 = vmatprep.subr.mxu0 0.0
        %2336 = vmatpush1.msra.mxu0 0.0
        %2337 = vmatprep.subr.mxu0 0.0
        %2338 = vmatpush1.msra.mxu0 0.0
        %2339 = vmatprep.subr.mxu0 0.0
        %2340 = vmatpush1.msra.mxu0 0.0
        %2341 = vmatprep.mubr.f32.mxu0 0.0
        %2342 = vmatmul.mubr.f32.gmra.mrb[0].mxu0 %v2275
        %v2343 = vpop.f32.mrb[0].mxu0
        %v2344 = vadd.f32 0.0, %v2343
        %v2345 = vpop.f32.mrb[0].mxu0
        %2346 = vdwg.mxu0
        %v2348 = vsel %vm1476, %v2121, 0
        %2350 = vmatprep.subr.mxu0 0.0
        %2351 = vmatpush1.msra.mxu0 %v2127
        %2352 = vmatprep.subr.mxu0 0.0
        %2353 = vmatpush1.msra.mxu0 0.0
        %2354 = vmatprep.subr.mxu0 0.0
        %2355 = vmatpush1.msra.mxu0 0.0
        %2356 = vmatprep.subr.mxu0 0.0
        %2357 = vmatpush1.msra.mxu0 0.0
        %2358 = vmatprep.subr.mxu0 0.0
        %2359 = vmatpush1.msra.mxu0 0.0
        %2360 = vmatprep.subr.mxu0 0.0
        %2361 = vmatpush1.msra.mxu0 0.0
        %2362 = vmatprep.subr.mxu0 0.0
        %2363 = vmatpush1.msra.mxu0 0.0
        %2364 = vmatprep.subr.mxu0 0.0
        %2365 = vmatpush1.msra.mxu0 0.0
        %2366 = vmatprep.subr.mxu0 0.0
        %2367 = vmatpush1.msra.mxu0 0.0
        %2368 = vmatprep.subr.mxu0 0.0
        %2369 = vmatpush1.msra.mxu0 0.0
        %2370 = vmatprep.subr.mxu0 0.0
        %2371 = vmatpush1.msra.mxu0 0.0
        %2372 = vmatprep.subr.mxu0 0.0
        %2373 = vmatpush1.msra.mxu0 0.0
        %2374 = vmatprep.subr.mxu0 0.0
        %2375 = vmatpush1.msra.mxu0 0.0
        %2376 = vmatprep.subr.mxu0 0.0
        %2377 = vmatpush1.msra.mxu0 0.0
        %2378 = vmatprep.subr.mxu0 0.0
        %2379 = vmatpush1.msra.mxu0 0.0
        %2380 = vmatprep.subr.mxu0 0.0
        %2381 = vmatpush1.msra.mxu0 0.0
        %2382 = vmatprep.subr.mxu0 0.0
        %2383 = vmatpush1.msra.mxu0 0.0
        %2384 = vmatprep.subr.mxu0 0.0
        %2385 = vmatpush1.msra.mxu0 0.0
        %2386 = vmatprep.subr.mxu0 0.0
        %2387 = vmatpush1.msra.mxu0 0.0
        %2388 = vmatprep.subr.mxu0 0.0
        %2389 = vmatpush1.msra.mxu0 0.0
        %2390 = vmatprep.subr.mxu0 0.0
        %2391 = vmatpush1.msra.mxu0 0.0
        %2392 = vmatprep.subr.mxu0 0.0
        %2393 = vmatpush1.msra.mxu0 0.0
        %2394 = vmatprep.subr.mxu0 0.0
        %2395 = vmatpush1.msra.mxu0 0.0
        %2396 = vmatprep.subr.mxu0 0.0
        %2397 = vmatpush1.msra.mxu0 0.0
        %2398 = vmatprep.subr.mxu0 0.0
        %2399 = vmatpush1.msra.mxu0 0.0
        %2400 = vmatprep.subr.mxu0 0.0
        %2401 = vmatpush1.msra.mxu0 0.0
        %2402 = vmatprep.subr.mxu0 0.0
        %2403 = vmatpush1.msra.mxu0 0.0
        %2404 = vmatprep.subr.mxu0 0.0
        %2405 = vmatpush1.msra.mxu0 0.0
        %2406 = vmatprep.subr.mxu0 0.0
        %2407 = vmatpush1.msra.mxu0 0.0
        %2408 = vmatprep.subr.mxu0 0.0
        %2409 = vmatpush1.msra.mxu0 0.0
        %2410 = vmatprep.subr.mxu0 0.0
        %2411 = vmatpush1.msra.mxu0 0.0
        %2412 = vmatprep.subr.mxu0 0.0
        %2413 = vmatpush1.msra.mxu0 0.0
        %2414 = vmatprep.mubr.f32.mxu0 0.0
        %2415 = vmatmul.mubr.f32.gmra.mrb[0].mxu0 %v2348
        %v2416 = vpop.f32.mrb[0].mxu0
        %v2417 = vadd.f32 0.0, %v2416
        %v2418 = vpop.f32.mrb[0].mxu0
        %2419 = vdwg.mxu0
        %v2420 = vadd.f32 %v2198, %v2271
        %v2421 = vadd.f32 %v2420, %v2344
        %v2422 = vadd.f32 %v2421, %v2417
        %v2423 = vld [vmem:[%s7] sm:$0x1]
        %v2425 = vlaneseq
        %v2426 = vshrl.u32 %v2425, 7
        %v2427 = vsub.s32 0, %v2426
        %v2428 = vrot.slane %v2423, %v2427
        %v2430 = vadd.f32 %v2422, %v2428
        %v2431 = vadd.f32 %v2430, %v464
        %v2432 = vsel %vm465, %v2431, 0.0
        %2433 = vadd.xlane.f32.xlu0 %v2432
        %v2434 = vpop.xlane.xlu0 %2433
        %v2435 = vmul.f32 %v2434, %v469
        %v2436 = vsub.f32 %v2431, %v2435
        %v2437 = vmul.f32 %v2436, %v2436
        %v2438 = vsel %vm465, %v2437, 0.0
        %2439 = vadd.xlane.f32.xlu0 %v2438
        %v2440 = vpop.xlane.xlu0 %2439
        %v2441 = vmul.f32 %v2440, %v469
        %v2442 = vadd.f32 %v2441, 1e-05
        %v2443 = vrsqrt.pop %v2442
        %v2444 = vmul.f32 %v2436, %v2443
        %v2445 = vld [vmem:[%s2 + $0x1] sm:$0x1]
        %v2446 = vlaneseq
        %v2447 = vshrl.u32 %v2446, 7
        %v2448 = vsub.s32 0, %v2447
        %v2449 = vrot.slane %v2445, %v2448
        %v2450 = vmul.f32 %v2444, %v2449
        %v2451 = vld [vmem:[%s3 + $0x1] sm:$0x1]
        %v2452 = vlaneseq
        %v2453 = vshrl.u32 %v2452, 7
        %v2454 = vsub.s32 0, %v2453
        %v2455 = vrot.slane %v2451, %v2454
        %v2456 = vadd.f32 %v2450, %v2455
        %v2457 = vld [vmem:[%s8] sm:$0xff]
        %v2458 = vld [vmem:[%s8 + $0x8] sm:$0xff]
        %v2459 = vld [vmem:[%s8 + $0x10] sm:$0xff]
        %v2460 = vld [vmem:[%s8 + $0x18] sm:$0xff]
        %v2461 = vld [vmem:[%s9] sm:$0x1]
        %v2463 = vlaneseq
        %v2464 = vshrl.u32 %v2463, 7
        %v2465 = vsub.s32 0, %v2464
        %v2466 = vrot.slane %v2461, %v2465
        %v2469 = vsel %vm465, %v2456, 0
        %2471 = vmatprep.subr.mxu0 0.0
        %2472 = vmatpush1.msra.mxu0 %v2457
        %2473 = vmatprep.subr.mxu0 0.0
        %2474 = vmatpush1.msra.mxu0 %v2458
        %2475 = vmatprep.subr.mxu0 0.0
        %2476 = vmatpush1.msra.mxu0 %v2459
        %2477 = vmatprep.subr.mxu0 0.0
        %2478 = vmatpush1.msra.mxu0 %v2460
        %2479 = vmatprep.subr.mxu0 0.0
        %2480 = vmatpush1.msra.mxu0 0.0
        %2481 = vmatprep.subr.mxu0 0.0
        %2482 = vmatpush1.msra.mxu0 0.0
        %2483 = vmatprep.subr.mxu0 0.0
        %2484 = vmatpush1.msra.mxu0 0.0
        %2485 = vmatprep.subr.mxu0 0.0
        %2486 = vmatpush1.msra.mxu0 0.0
        %2487 = vmatprep.subr.mxu0 0.0
        %2488 = vmatpush1.msra.mxu0 0.0
        %2489 = vmatprep.subr.mxu0 0.0
        %2490 = vmatpush1.msra.mxu0 0.0
        %2491 = vmatprep.subr.mxu0 0.0
        %2492 = vmatpush1.msra.mxu0 0.0
        %2493 = vmatprep.subr.mxu0 0.0
        %2494 = vmatpush1.msra.mxu0 0.0
        %2495 = vmatprep.subr.mxu0 0.0
        %2496 = vmatpush1.msra.mxu0 0.0
        %2497 = vmatprep.subr.mxu0 0.0
        %2498 = vmatpush1.msra.mxu0 0.0
        %2499 = vmatprep.subr.mxu0 0.0
        %2500 = vmatpush1.msra.mxu0 0.0
        %2501 = vmatprep.subr.mxu0 0.0
        %2502 = vmatpush1.msra.mxu0 0.0
        %2503 = vmatprep.subr.mxu0 0.0
        %2504 = vmatpush1.msra.mxu0 0.0
        %2505 = vmatprep.subr.mxu0 0.0
        %2506 = vmatpush1.msra.mxu0 0.0
        %2507 = vmatprep.subr.mxu0 0.0
        %2508 = vmatpush1.msra.mxu0 0.0
        %2509 = vmatprep.subr.mxu0 0.0
        %2510 = vmatpush1.msra.mxu0 0.0
        %2511 = vmatprep.subr.mxu0 0.0
        %2512 = vmatpush1.msra.mxu0 0.0
        %2513 = vmatprep.subr.mxu0 0.0
        %2514 = vmatpush1.msra.mxu0 0.0
        %2515 = vmatprep.subr.mxu0 0.0
        %2516 = vmatpush1.msra.mxu0 0.0
        %2517 = vmatprep.subr.mxu0 0.0
        %2518 = vmatpush1.msra.mxu0 0.0
        %2519 = vmatprep.subr.mxu0 0.0
        %2520 = vmatpush1.msra.mxu0 0.0
        %2521 = vmatprep.subr.mxu0 0.0
        %2522 = vmatpush1.msra.mxu0 0.0
        %2523 = vmatprep.subr.mxu0 0.0
        %2524 = vmatpush1.msra.mxu0 0.0
        %2525 = vmatprep.subr.mxu0 0.0
        %2526 = vmatpush1.msra.mxu0 0.0
        %2527 = vmatprep.subr.mxu0 0.0
        %2528 = vmatpush1.msra.mxu0 0.0
        %2529 = vmatprep.subr.mxu0 0.0
        %2530 = vmatpush1.msra.mxu0 0.0
        %2531 = vmatprep.subr.mxu0 0.0
        %2532 = vmatpush1.msra.mxu0 0.0
        %2533 = vmatprep.subr.mxu0 0.0
        %2534 = vmatpush1.msra.mxu0 0.0
        %2535 = vmatprep.mubr.f32.mxu0 0.0
        %2536 = vmatmul.mubr.f32.gmra.mrb[0].mxu0 %v2469
        %v2537 = vpop.f32.mrb[0].mxu0
        %v2538 = vadd.f32 %v2466, %v2537
        %v2539 = vpop.f32.mrb[0].mxu0
        %2540 = vdwg.mxu0
        %v2541 = vmax.f32 %v2538, 0.0
        %v2542 = vld [vmem:[%s10] sm:$0xff]
        %v2543 = vld [vmem:[%s10 + $0x8] sm:$0xff]
        %v2544 = vld [vmem:[%s10 + $0x10] sm:$0xff]
        %v2545 = vld [vmem:[%s10 + $0x18] sm:$0xff]
        %v2546 = vld [vmem:[%s10 + $0x20] sm:$0xff]
        %v2547 = vld [vmem:[%s10 + $0x28] sm:$0xff]
        %v2548 = vld [vmem:[%s10 + $0x30] sm:$0xff]
        %v2549 = vld [vmem:[%s10 + $0x38] sm:$0xff]
        %v2550 = vld [vmem:[%s11] sm:$0x1]
        %v2552 = vlaneseq
        %v2553 = vshrl.u32 %v2552, 7
        %v2554 = vsub.s32 0, %v2553
        %v2555 = vrot.slane %v2550, %v2554
        %vm2557 = vcmask 523264
        %v2559 = vsel %vm2557, %v2541, 0
        %2561 = vmatprep.subr.mxu0 0.0
        %2562 = vmatpush1.msra.mxu0 %v2542
        %2563 = vmatprep.subr.mxu0 0.0
        %2564 = vmatpush1.msra.mxu0 %v2543
        %2565 = vmatprep.subr.mxu0 0.0
        %2566 = vmatpush1.msra.mxu0 %v2544
        %2567 = vmatprep.subr.mxu0 0.0
        %2568 = vmatpush1.msra.mxu0 %v2545
        %2569 = vmatprep.subr.mxu0 0.0
        %2570 = vmatpush1.msra.mxu0 %v2546
        %2571 = vmatprep.subr.mxu0 0.0
        %2572 = vmatpush1.msra.mxu0 %v2547
        %2573 = vmatprep.subr.mxu0 0.0
        %2574 = vmatpush1.msra.mxu0 %v2548
        %2575 = vmatprep.subr.mxu0 0.0
        %2576 = vmatpush1.msra.mxu0 %v2549
        %2577 = vmatprep.subr.mxu0 0.0
        %2578 = vmatpush1.msra.mxu0 0.0
        %2579 = vmatprep.subr.mxu0 0.0
        %2580 = vmatpush1.msra.mxu0 0.0
        %2581 = vmatprep.subr.mxu0 0.0
        %2582 = vmatpush1.msra.mxu0 0.0
        %2583 = vmatprep.subr.mxu0 0.0
        %2584 = vmatpush1.msra.mxu0 0.0
        %2585 = vmatprep.subr.mxu0 0.0
        %2586 = vmatpush1.msra.mxu0 0.0
        %2587 = vmatprep.subr.mxu0 0.0
        %2588 = vmatpush1.msra.mxu0 0.0
        %2589 = vmatprep.subr.mxu0 0.0
        %2590 = vmatpush1.msra.mxu0 0.0
        %2591 = vmatprep.subr.mxu0 0.0
        %2592 = vmatpush1.msra.mxu0 0.0
        %2593 = vmatprep.subr.mxu0 0.0
        %2594 = vmatpush1.msra.mxu0 0.0
        %2595 = vmatprep.subr.mxu0 0.0
        %2596 = vmatpush1.msra.mxu0 0.0
        %2597 = vmatprep.subr.mxu0 0.0
        %2598 = vmatpush1.msra.mxu0 0.0
        %2599 = vmatprep.subr.mxu0 0.0
        %2600 = vmatpush1.msra.mxu0 0.0
        %2601 = vmatprep.subr.mxu0 0.0
        %2602 = vmatpush1.msra.mxu0 0.0
        %2603 = vmatprep.subr.mxu0 0.0
        %2604 = vmatpush1.msra.mxu0 0.0
        %2605 = vmatprep.subr.mxu0 0.0
        %2606 = vmatpush1.msra.mxu0 0.0
        %2607 = vmatprep.subr.mxu0 0.0
        %2608 = vmatpush1.msra.mxu0 0.0
        %2609 = vmatprep.subr.mxu0 0.0
        %2610 = vmatpush1.msra.mxu0 0.0
        %2611 = vmatprep.subr.mxu0 0.0
        %2612 = vmatpush1.msra.mxu0 0.0
        %2613 = vmatprep.subr.mxu0 0.0
        %2614 = vmatpush1.msra.mxu0 0.0
        %2615 = vmatprep.subr.mxu0 0.0
        %2616 = vmatpush1.msra.mxu0 0.0
        %2617 = vmatprep.subr.mxu0 0.0
        %2618 = vmatpush1.msra.mxu0 0.0
        %2619 = vmatprep.subr.mxu0 0.0
        %2620 = vmatpush1.msra.mxu0 0.0
        %2621 = vmatprep.subr.mxu0 0.0
        %2622 = vmatpush1.msra.mxu0 0.0
        %2623 = vmatprep.subr.mxu0 0.0
        %2624 = vmatpush1.msra.mxu0 0.0
        %2625 = vmatprep.mubr.f32.mxu0 0.0
        %2626 = vmatmul.mubr.f32.gmra.mrb[0].mxu0 %v2559
        %v2627 = vpop.f32.mrb[0].mxu0
        %v2628 = vadd.f32 %v2555, %v2627
        %v2629 = vpop.f32.mrb[0].mxu0
        %2630 = vdwg.mxu0
        %v2631 = vadd.f32 %v2628, %v2431
        %2632 = vst.msk [vmem:[%s448] sm:$0xff] %vm465, %v2631
        %2633 = vst.msk [vmem:[%s455] sm:$0xff] %vm1476, %v1828
        %2634 = vst.msk [vmem:[%s455 + $0x8] sm:$0xff] %vm1476, %v1829
        %2635 = vst.msk [vmem:[%s455 + $0x10] sm:$0xff] %vm1476, %v1830
        %2636 = vst.msk [vmem:[%s455 + $0x18] sm:$0xff] %vm1476, %v1831
        %s2637 = sand.u32 %s301, 1
        %s2638 = scalar_lea.sflag [#allocation3], %s2637
        %s2639 = sand.u32 %s301, 1
        %s2640 = smul.addr %s2639, 8
        %s2641 = scalar_lea.vmem [#allocation2], %s2640
        %s2642 = sand.u32 %s327, 1
        %s2643 = scalar_lea.sflag [#allocation5], %s2642
        %s2644 = sand.u32 %s327, 1
        %s2645 = smul.addr %s2644, 32
        %s2646 = scalar_lea.vmem [#allocation4], %s2645
        // Predicated region
        $region69: #{tpu_custom_call.1} parent=67 // pred_check
          %p2647 = pneg %p311
        $region70: #{tpu_custom_call.1} parent=67 // pred_check_branch
          %2649 = sbr.rel (%p2647) target = $region72
        $region71: #{tpu_custom_call.1} parent=67 // pred_region
          %s2651 = ssub.s32 128, 128
          %2652 = vsyncadd %s2638, %s2651
          %s2653 = smul.addr %s31, 128
          %s2654 = scalar_lea.hbm %s12, %s2653
          %s2656 = sshll.u32 %s2641, 4
          %s2657 = int_to_ptr.vmem [resolvable:$true] %s2656
          %2659 = dma.vmem_to_hbm [thread:$0]  %s2657, 128, %s2654, %s2638
        $region72: #{tpu_custom_call.1} parent=67 // pred_fallthru
          _
        // Predicated region
        $region73: #{tpu_custom_call.1} parent=67 // pred_check
          %p2660 = pneg %p337
        $region74: #{tpu_custom_call.1} parent=67 // pred_check_branch
          %2662 = sbr.rel (%p2660) target = $region76
        $region75: #{tpu_custom_call.1} parent=67 // pred_region
          %s2664 = ssub.s32 512, 512
          %2665 = vsyncadd %s2643, %s2664
          %s2666 = smul.addr %s31, 4
          %s2667 = smul.addr %s2666, 128
          %s2668 = scalar_lea.hbm %s13, %s2667
          %s2669 = sshll.u32 %s2646, 4
          %s2670 = int_to_ptr.vmem [resolvable:$true] %s2669
          %2675 = dma.vmem_to_hbm [thread:$0]  %s2670, 512, %s2668, %s2643, 128, 128, 8
        $region76: #{tpu_custom_call.1} parent=67 // pred_fallthru
          _
      $region68: #{tpu_custom_call.1} parent=5 // pred_fallthru
        _
      %p2676 = scmp.le.s32.totalorder 2, %s26
      // Predicated region
      $region77: #{tpu_custom_call.1} parent=5 // pred_check
        %p2677 = pneg %p2676
      $region78: #{tpu_custom_call.1} parent=5 // pred_check_branch
        %2679 = sbr.rel (%p2677) target = $region80
      $region79: #{tpu_custom_call.1} parent=5 // pred_region
        %s2680 = ssub.s32 %s26, 2
        // Predicated region
        $region81: #{tpu_custom_call.1} parent=79 // pred_check
          %p2681 = pneg %p317
        $region82: #{tpu_custom_call.1} parent=79 // pred_check_branch
          %2683 = sbr.rel (%p2681) target = $region84
        $region83: #{tpu_custom_call.1} parent=79 // pred_region
          %s2684 = sand.u32 %s302, 1
          %s2685 = scalar_lea.sflag [#allocation3], %s2684
          %s2686 = sand.u32 %s302, 1
          %s2687 = smul.addr %s2686, 8
          %s2688 = scalar_lea.vmem [#allocation2], %s2687
          %2689 = dma.done %s2685, 128
        $region84: #{tpu_custom_call.1} parent=79 // pred_fallthru
          _
        // Predicated region
        $region85: #{tpu_custom_call.1} parent=79 // pred_check
          %p2690 = pneg %p343
        $region86: #{tpu_custom_call.1} parent=79 // pred_check_branch
          %2692 = sbr.rel (%p2690) target = $region88
        $region87: #{tpu_custom_call.1} parent=79 // pred_region
          %s2693 = sand.u32 %s328, 1
          %s2694 = scalar_lea.sflag [#allocation5], %s2693
          %s2695 = sand.u32 %s328, 1
          %s2696 = smul.addr %s2695, 32
          %s2697 = scalar_lea.vmem [#allocation4], %s2696
          %2698 = dma.done %s2694, 512
        $region88: #{tpu_custom_call.1} parent=79 // pred_fallthru
          _
      $region80: #{tpu_custom_call.1} parent=5 // pred_fallthru
        _
    $region6: #{tpu_custom_call.1} parent=1 // loop_footer
      %s30 = sadd.s32 1, %s26
    $region7: #{tpu_custom_call.1} parent=1 // loop_footer_branch
      %25 = sbr.rel target = $region3
    $region8: #{tpu_custom_call.1} parent=1 // loop_exit
      _
    %2699 = vsyncpa [#allocation3], 1
    %s2700 = scalar_lea.sflag [#allocation3], 1
    %2701 = vsyncpa %s2700, 1
    %2702 = vsyncpa [#allocation5], 1
    %s2703 = scalar_lea.sflag [#allocation5], 1
    %2704 = vsyncpa %s2703, 1

</llo_original>
